<compile_context>
chip_gen: v7x
topology: tpu7x:2x2x1
jax: 0.10.0
libtpu: 0.0.40
codegen_flags: <defaults>
</compile_context>

<pallas_src>
import functools

import numpy as np

import jax
import jax.numpy as jnp
from jax.experimental import pallas as pl
from jax.experimental.pallas import tpu as pltpu


def _fused_norm_cnn_kernel(x_ref, scale_ref, shift_ref, masks_ref, w_ref, b_ref,
                           fcw_ref, fcb_ref, o_ref, *, width):
    """Fused forward for one block of images: normalize -> conv3x3 -> ReLU -> FC.

    x_ref:     (B, Cp, HW)        raw images, channels zero-padded to Cp (multiple of 8)
    scale_ref: (Cp, 1)            1/std    (0 in padded channels)
    shift_ref: (Cp, 1)            mean/std (0 in padded channels)
    masks_ref: (9, HW)            1.0 where a tap stays inside the image, else 0.0
    w_ref:     (Cout, 9*Cp)       conv weight, columns ordered (ky, kx, ci)
    b_ref:     (Cout, 1)          conv bias
    fcw_ref:   (Cout, HW, Ncls)   classifier weight (NCHW flatten order, split per channel)
    fcb_ref:   (1, Ncls)          classifier bias
    o_ref:     (1, B, Ncls)       logits for this block
    """
    bsz, cp, hw = x_ref.shape
    cout = w_ref.shape[0]
    ncls = fcw_ref.shape[2]

    # Input normalization, divide-free: (x - mean)/std == x*(1/std) - mean/std.
    # Padded channels have scale = shift = 0 so they stay exactly zero.
    xn = (x_ref[...] * scale_ref[...] - shift_ref[...]).reshape(bsz * cp, hw)

    masks = masks_ref[...]                                   # (9, HW)

    # Nine im2col taps: static XLU lane rotation + precomputed boundary mask.
    # The rotation wraps within each image's own HW lanes; the mask zeroes every
    # lane whose source would lie outside the image (SAME zero padding).
    taps = []
    t = 0
    for oy in (-1, 0, 1):
        for ox in (-1, 0, 1):
            amt = (-(oy * width + ox)) % hw                  # v[:, p] = xn[:, p + oy*W + ox]
            v = pltpu.roll(xn, amt, axis=1) if amt else xn
            v = v * masks[t:t + 1, :]
            taps.append(v.reshape(bsz, cp, hw))
            t += 1
    # (B, 9*Cp, HW): every chunk is a full 8-sublane block -> aligned placement.
    patches = jnp.concatenate(taps, axis=1)

    # 3x3 SAME conv + bias + ReLU: one small MXU matmul per image in the block.
    wmat = w_ref[...]
    bias = b_ref[...]
    act = []
    for b in range(bsz):
        a = jnp.dot(wmat, patches[b], preferred_element_type=jnp.float32)   # (Cout, HW)
        act.append(jnp.maximum(a + bias, 0.0))

    # Classifier without a sublane->lane flatten: accumulate Cout per-channel
    # (B, HW) @ (HW, Ncls) matmuls.  lhs gathers one sublane row per image (cheap
    # sublane placement), the contraction stays lane-dense.
    logits = jnp.zeros((bsz, ncls), dtype=jnp.float32)
    for ch in range(cout):
        lhs = jnp.concatenate([act[b][ch:ch + 1, :] for b in range(bsz)], axis=0)
        logits = logits + jnp.dot(lhs, fcw_ref[ch], preferred_element_type=jnp.float32)
    logits = logits + fcb_ref[...]

    o_ref[0] = logits.astype(o_ref.dtype)


@jax.jit
def model_with_normalize(x_nchw, mean, std, conv_w, conv_b, fc_w, fc_b):
    """Forward pass of ModelWithNormalize with the synthetic inner CNN, fully fused."""
    n, c, h, w = x_nchw.shape
    cout = conv_w.shape[3]
    ncls = fc_w.shape[1]
    hw = h * w

    cp = ((c + 7) // 8) * 8                       # channels -> aligned 8-sublane taps
    ncls_pad = ((ncls + 127) // 128) * 128        # lane-dense fc weights / logit stores

    # Two grid blocks when possible: v7x runs one per TensorCore; on single-TC
    # v5e/v6e the second step only costs ~0.35us.  For very large N, size the block
    # against v7x's 32 MiB scoped VMEM (~150 KiB of live intermediates per image).
    num_blocks = 2 if n >= 2 else 1
    bsz = -(-n // num_blocks)                     # images per block (ceil)
    n_pad = num_blocks * bsz

    # ---- one-time wrapper glue (O(input + params)) ----
    x3 = jnp.pad(x_nchw.reshape(n, c, hw),
                 ((0, n_pad - n), (0, cp - c), (0, 0)))                 # (n_pad, Cp, HW)
    scale = jnp.pad(1.0 / std, (0, cp - c)).reshape(cp, 1).astype(x_nchw.dtype)
    shift = jnp.pad(mean / std, (0, cp - c)).reshape(cp, 1).astype(x_nchw.dtype)

    # Conv weight (3,3,C,Cout) HWIO -> (Cout, 9*Cp), column index (ky*3+kx)*Cp + ci.
    w_pad = jnp.pad(conv_w, ((0, 0), (0, 0), (0, cp - c), (0, 0)))
    w_mat = jnp.transpose(w_pad.reshape(9 * cp, cout))                  # (Cout, 9*Cp)
    b2 = conv_b.reshape(cout, 1)

    # FC weight rows are NCHW-flatten order c*HW + p -> (Cout, HW, NclsPad).
    fcw3 = jnp.pad(fc_w.reshape(cout, hw, ncls),
                   ((0, 0), (0, 0), (0, ncls_pad - ncls)))
    fcb2 = jnp.pad(fc_b.reshape(1, ncls), ((0, 0), (0, ncls_pad - ncls)))

    # Precomputed per-tap validity masks (compile-time constants; shifts stay < HW).
    pos = np.arange(hw)
    row_i, col_i = pos // w, pos % w
    rows = []
    for oy in (-1, 0, 1):
        for ox in (-1, 0, 1):
            ok = np.ones(hw, dtype=bool)
            if oy > 0:
                ok &= row_i < h - oy
            if oy < 0:
                ok &= row_i >= -oy
            if ox > 0:
                ok &= col_i < w - ox
            if ox < 0:
                ok &= col_i >= -ox
            rows.append(ok)
    masks = jnp.asarray(np.stack(rows).astype(np.float32))              # (9, HW)

    kernel = functools.partial(_fused_norm_cnn_kernel, width=w)

    flops = n_pad * (2 * hw * 9 * cp * cout + 2 * cout * hw * ncls_pad)
    bytes_accessed = 4 * (x3.size + scale.size + shift.size + masks.size + w_mat.size
                          + b2.size + fcw3.size + fcb2.size + n_pad * ncls_pad)

    out = pl.pallas_call(
        kernel,
        out_shape=jax.ShapeDtypeStruct((num_blocks, bsz, ncls_pad), x_nchw.dtype),
        grid=(num_blocks,),
        in_specs=[
            pl.BlockSpec((bsz, cp, hw), lambda i: (i, 0, 0)),
            pl.BlockSpec((cp, 1), lambda i: (0, 0)),
            pl.BlockSpec((cp, 1), lambda i: (0, 0)),
            pl.BlockSpec((9, hw), lambda i: (0, 0)),
            pl.BlockSpec((cout, 9 * cp), lambda i: (0, 0)),
            pl.BlockSpec((cout, 1), lambda i: (0, 0)),
            pl.BlockSpec((cout, hw, ncls_pad), lambda i: (0, 0, 0)),
            pl.BlockSpec((1, ncls_pad), lambda i: (0, 0)),
        ],
        out_specs=pl.BlockSpec((1, bsz, ncls_pad), lambda i: (i, 0, 0)),
        compiler_params=pltpu.CompilerParams(
            dimension_semantics=("parallel",)),
        cost_estimate=pl.CostEstimate(flops=flops, transcendentals=0,
                                      bytes_accessed=bytes_accessed),
    )(x3, scale, shift, masks, w_mat, b2, fcw3, fcb2)

    return out.reshape(n_pad, ncls_pad)[:n, :ncls]


def _reference(x_nchw, mean, std, conv_w, conv_b, fc_w, fc_b):
    """Pure-JAX reference of the same forward pass (sanity check)."""
    xn = (x_nchw - mean.reshape(1, -1, 1, 1)) / std.reshape(1, -1, 1, 1)
    y = jax.lax.conv_general_dilated(
        xn, conv_w, window_strides=(1, 1), padding="SAME",
        dimension_numbers=("NCHW", "HWIO", "NCHW"),
        precision=jax.lax.Precision.HIGHEST)
    y = jnp.maximum(y + conv_b.reshape(1, -1, 1, 1), 0.0)
    feats = y.reshape(x_nchw.shape[0], -1)                  # NCHW flatten order
    return jnp.dot(feats, fc_w, precision=jax.lax.Precision.HIGHEST) + fc_b.reshape(1, -1)


if __name__ == "__main__":
    # Small, deterministic setup consistent with an image-normalization wrapper.
    N, C, H, W = 4, 3, 16, 16
    COUT, NCLASSES = 8, 10

    key = jax.random.PRNGKey(0)
    k_x, k_w1, k_b1, k_w2, k_b2 = jax.random.split(key, 5)

    x = jax.random.uniform(k_x, (N, C, H, W), dtype=jnp.float32)        # NCHW input

    # transforms.Normalize-style per-channel statistics (CIFAR-10 constants).
    mean = jnp.array([0.4914, 0.4822, 0.4465], dtype=jnp.float32)
    std = jnp.array([0.2470, 0.2435, 0.2616], dtype=jnp.float32)

    # Synthetic inner-model parameters (deterministic init, not a checkpoint).
    # fc_w rows are in PyTorch NCHW flatten order: index = c*H*W + y*W + x.
    conv_w = 0.1 * jax.random.normal(k_w1, (3, 3, C, COUT), dtype=jnp.float32)
    conv_b = 0.1 * jax.random.normal(k_b1, (COUT,), dtype=jnp.float32)
    fc_w = 0.05 * jax.random.normal(k_w2, (H * W * COUT, NCLASSES), dtype=jnp.float32)
    fc_b = 0.05 * jax.random.normal(k_b2, (NCLASSES,), dtype=jnp.float32)

    out = model_with_normalize(x, mean, std, conv_w, conv_b, fc_w, fc_b)
    out = jax.block_until_ready(out)

    ref = _reference(x, mean, std, conv_w, conv_b, fc_w, fc_b)
    assert out.shape == (N, NCLASSES)
    assert jnp.allclose(out, ref, atol=5e-4, rtol=5e-4), "mismatch vs reference"

    print("KERNEL_OK")
</pallas_src>

<mosaic_0001>
module attributes {stable_mosaic.version = 11 : i64} {
  func.func @_fused_norm_cnn_kernel(%arg0: i32, %arg1: memref<2x8x256xf32, #tpu.memory_space<vmem>>, %arg2: memref<8x1xf32, #tpu.memory_space<vmem>>, %arg3: memref<8x1xf32, #tpu.memory_space<vmem>>, %arg4: memref<9x256xf32, #tpu.memory_space<vmem>>, %arg5: memref<8x72xf32, #tpu.memory_space<vmem>>, %arg6: memref<8x1xf32, #tpu.memory_space<vmem>>, %arg7: memref<8x256x128xf32, #tpu.memory_space<vmem>>, %arg8: memref<1x128xf32, #tpu.memory_space<vmem>>, %arg9: memref<1x2x128xf32, #tpu.memory_space<vmem>>) attributes {dimension_semantics = [#tpu.dimension_semantics<parallel>], iteration_bounds = array<i64: 2>, scalar_prefetch = 0 : i64, scratch_operands = 0 : i64, tpu.core_type = #tpu.core_type<tc>, window_params = [{transform_indices = @transform_0, window_bounds = array<i64: 2, 8, 256>}, {pipeline_mode = #tpu.pipeline_mode<synchronous>, transform_indices = @transform_1, window_bounds = array<i64: 8, 1>}, {pipeline_mode = #tpu.pipeline_mode<synchronous>, transform_indices = @transform_2, window_bounds = array<i64: 8, 1>}, {pipeline_mode = #tpu.pipeline_mode<synchronous>, transform_indices = @transform_3, window_bounds = array<i64: 9, 256>}, {pipeline_mode = #tpu.pipeline_mode<synchronous>, transform_indices = @transform_4, window_bounds = array<i64: 8, 72>}, {pipeline_mode = #tpu.pipeline_mode<synchronous>, transform_indices = @transform_5, window_bounds = array<i64: 8, 1>}, {pipeline_mode = #tpu.pipeline_mode<synchronous>, transform_indices = @transform_6, window_bounds = array<i64: 8, 256, 128>}, {pipeline_mode = #tpu.pipeline_mode<synchronous>, transform_indices = @transform_7, window_bounds = array<i64: 1, 128>}, {transform_indices = @transform_8, window_bounds = array<i64: 1, 2, 128>}]} {
    %c0 = arith.constant 0 : index
    %c0_0 = arith.constant 0 : index
    %c0_1 = arith.constant 0 : index
    %0 = vector.load %arg1[%c0, %c0_0, %c0_1] : memref<2x8x256xf32, #tpu.memory_space<vmem>>, vector<2x8x256xf32>
    %c0_2 = arith.constant 0 : index
    %c0_3 = arith.constant 0 : index
    %1 = vector.load %arg2[%c0_2, %c0_3] : memref<8x1xf32, #tpu.memory_space<vmem>>, vector<8x1xf32>
    %2 = vector.shape_cast %1 : vector<8x1xf32> to vector<1x8x1xf32>
    %3 = vector.broadcast %2 : vector<1x8x1xf32> to vector<2x8x256xf32>
    %4 = arith.mulf %0, %3 : vector<2x8x256xf32>
    %c0_4 = arith.constant 0 : index
    %c0_5 = arith.constant 0 : index
    %5 = vector.load %arg3[%c0_4, %c0_5] : memref<8x1xf32, #tpu.memory_space<vmem>>, vector<8x1xf32>
    %6 = vector.shape_cast %5 : vector<8x1xf32> to vector<1x8x1xf32>
    %7 = vector.broadcast %6 : vector<1x8x1xf32> to vector<2x8x256xf32>
    %8 = arith.subf %4, %7 : vector<2x8x256xf32>
    %9 = vector.shape_cast %8 : vector<2x8x256xf32> to vector<16x256xf32>
    %c0_6 = arith.constant 0 : index
    %c0_7 = arith.constant 0 : index
    %10 = vector.load %arg4[%c0_6, %c0_7] : memref<9x256xf32, #tpu.memory_space<vmem>>, vector<9x256xf32>
    %c17_i32 = arith.constant 17 : i32
    %11 = tpu.dynamic_rotate %9 by %c17_i32 dim 1 : vector<16x256xf32>, i32 -> vector<16x256xf32>
    %12 = vector.extract_strided_slice %10 {offsets = [0, 0], sizes = [1, 256], strides = [1, 1]} : vector<9x256xf32> to vector<1x256xf32>
    %13 = vector.broadcast %12 : vector<1x256xf32> to vector<16x256xf32>
    %14 = arith.mulf %11, %13 : vector<16x256xf32>
    %15 = vector.shape_cast %14 : vector<16x256xf32> to vector<2x8x256xf32>
    %c16_i32 = arith.constant 16 : i32
    %16 = tpu.dynamic_rotate %9 by %c16_i32 dim 1 : vector<16x256xf32>, i32 -> vector<16x256xf32>
    %17 = vector.extract_strided_slice %10 {offsets = [1, 0], sizes = [1, 256], strides = [1, 1]} : vector<9x256xf32> to vector<1x256xf32>
    %18 = vector.broadcast %17 : vector<1x256xf32> to vector<16x256xf32>
    %19 = arith.mulf %16, %18 : vector<16x256xf32>
    %20 = vector.shape_cast %19 : vector<16x256xf32> to vector<2x8x256xf32>
    %c15_i32 = arith.constant 15 : i32
    %21 = tpu.dynamic_rotate %9 by %c15_i32 dim 1 : vector<16x256xf32>, i32 -> vector<16x256xf32>
    %22 = vector.extract_strided_slice %10 {offsets = [2, 0], sizes = [1, 256], strides = [1, 1]} : vector<9x256xf32> to vector<1x256xf32>
    %23 = vector.broadcast %22 : vector<1x256xf32> to vector<16x256xf32>
    %24 = arith.mulf %21, %23 : vector<16x256xf32>
    %25 = vector.shape_cast %24 : vector<16x256xf32> to vector<2x8x256xf32>
    %c1_i32 = arith.constant 1 : i32
    %26 = tpu.dynamic_rotate %9 by %c1_i32 dim 1 : vector<16x256xf32>, i32 -> vector<16x256xf32>
    %27 = vector.extract_strided_slice %10 {offsets = [3, 0], sizes = [1, 256], strides = [1, 1]} : vector<9x256xf32> to vector<1x256xf32>
    %28 = vector.broadcast %27 : vector<1x256xf32> to vector<16x256xf32>
    %29 = arith.mulf %26, %28 : vector<16x256xf32>
    %30 = vector.shape_cast %29 : vector<16x256xf32> to vector<2x8x256xf32>
    %31 = vector.extract_strided_slice %10 {offsets = [4, 0], sizes = [1, 256], strides = [1, 1]} : vector<9x256xf32> to vector<1x256xf32>
    %32 = vector.broadcast %31 : vector<1x256xf32> to vector<16x256xf32>
    %33 = arith.mulf %9, %32 : vector<16x256xf32>
    %34 = vector.shape_cast %33 : vector<16x256xf32> to vector<2x8x256xf32>
    %c255_i32 = arith.constant 255 : i32
    %35 = tpu.dynamic_rotate %9 by %c255_i32 dim 1 : vector<16x256xf32>, i32 -> vector<16x256xf32>
    %36 = vector.extract_strided_slice %10 {offsets = [5, 0], sizes = [1, 256], strides = [1, 1]} : vector<9x256xf32> to vector<1x256xf32>
    %37 = vector.broadcast %36 : vector<1x256xf32> to vector<16x256xf32>
    %38 = arith.mulf %35, %37 : vector<16x256xf32>
    %39 = vector.shape_cast %38 : vector<16x256xf32> to vector<2x8x256xf32>
    %c241_i32 = arith.constant 241 : i32
    %40 = tpu.dynamic_rotate %9 by %c241_i32 dim 1 : vector<16x256xf32>, i32 -> vector<16x256xf32>
    %41 = vector.extract_strided_slice %10 {offsets = [6, 0], sizes = [1, 256], strides = [1, 1]} : vector<9x256xf32> to vector<1x256xf32>
    %42 = vector.broadcast %41 : vector<1x256xf32> to vector<16x256xf32>
    %43 = arith.mulf %40, %42 : vector<16x256xf32>
    %44 = vector.shape_cast %43 : vector<16x256xf32> to vector<2x8x256xf32>
    %c240_i32 = arith.constant 240 : i32
    %45 = tpu.dynamic_rotate %9 by %c240_i32 dim 1 : vector<16x256xf32>, i32 -> vector<16x256xf32>
    %46 = vector.extract_strided_slice %10 {offsets = [7, 0], sizes = [1, 256], strides = [1, 1]} : vector<9x256xf32> to vector<1x256xf32>
    %47 = vector.broadcast %46 : vector<1x256xf32> to vector<16x256xf32>
    %48 = arith.mulf %45, %47 : vector<16x256xf32>
    %49 = vector.shape_cast %48 : vector<16x256xf32> to vector<2x8x256xf32>
    %c239_i32 = arith.constant 239 : i32
    %50 = tpu.dynamic_rotate %9 by %c239_i32 dim 1 : vector<16x256xf32>, i32 -> vector<16x256xf32>
    %51 = vector.extract_strided_slice %10 {offsets = [8, 0], sizes = [1, 256], strides = [1, 1]} : vector<9x256xf32> to vector<1x256xf32>
    %52 = vector.broadcast %51 : vector<1x256xf32> to vector<16x256xf32>
    %53 = arith.mulf %50, %52 : vector<16x256xf32>
    %54 = vector.shape_cast %53 : vector<16x256xf32> to vector<2x8x256xf32>
    %55 = tpu.concatenate %15, %20, %25, %30, %34, %39, %44, %49, %54 in 1 : vector<2x8x256xf32>, vector<2x8x256xf32>, vector<2x8x256xf32>, vector<2x8x256xf32>, vector<2x8x256xf32>, vector<2x8x256xf32>, vector<2x8x256xf32>, vector<2x8x256xf32>, vector<2x8x256xf32> -> vector<2x72x256xf32>
    %c0_8 = arith.constant 0 : index
    %c0_9 = arith.constant 0 : index
    %56 = vector.load %arg5[%c0_8, %c0_9] : memref<8x72xf32, #tpu.memory_space<vmem>>, vector<8x72xf32>
    %c0_10 = arith.constant 0 : index
    %c0_11 = arith.constant 0 : index
    %57 = vector.load %arg6[%c0_10, %c0_11] : memref<8x1xf32, #tpu.memory_space<vmem>>, vector<8x1xf32>
    %58 = vector.extract_strided_slice %55 {offsets = [0, 0, 0], sizes = [1, 72, 256], strides = [1, 1, 1]} : vector<2x72x256xf32> to vector<1x72x256xf32>
    %59 = vector.shape_cast %58 : vector<1x72x256xf32> to vector<72x256xf32>
    %cst = arith.constant dense<0.000000e+00> : vector<8x256xf32>
    %60 = tpu.matmul %56, %59, %cst {dimension_numbers = #tpu.dot_dimension_numbers<[1], [0], [0], [1], [0, 0, 1, 1], [], []>} : vector<8x72xf32>, vector<72x256xf32>, vector<8x256xf32> -> vector<8x256xf32>
    %61 = vector.broadcast %57 : vector<8x1xf32> to vector<8x256xf32>
    %62 = arith.addf %60, %61 : vector<8x256xf32>
    %cst_12 = arith.constant 0.000000e+00 : f32
    %63 = vector.broadcast %cst_12 : f32 to vector<8x256xf32>
    %64 = arith.maximumf %62, %63 : vector<8x256xf32>
    %65 = vector.extract_strided_slice %55 {offsets = [1, 0, 0], sizes = [1, 72, 256], strides = [1, 1, 1]} : vector<2x72x256xf32> to vector<1x72x256xf32>
    %66 = vector.shape_cast %65 : vector<1x72x256xf32> to vector<72x256xf32>
    %cst_13 = arith.constant dense<0.000000e+00> : vector<8x256xf32>
    %67 = tpu.matmul %56, %66, %cst_13 {dimension_numbers = #tpu.dot_dimension_numbers<[1], [0], [0], [1], [0, 0, 1, 1], [], []>} : vector<8x72xf32>, vector<72x256xf32>, vector<8x256xf32> -> vector<8x256xf32>
    %68 = vector.broadcast %57 : vector<8x1xf32> to vector<8x256xf32>
    %69 = arith.addf %67, %68 : vector<8x256xf32>
    %cst_14 = arith.constant 0.000000e+00 : f32
    %70 = vector.broadcast %cst_14 : f32 to vector<8x256xf32>
    %71 = arith.maximumf %69, %70 : vector<8x256xf32>
    %cst_15 = arith.constant 0.000000e+00 : f32
    %72 = vector.broadcast %cst_15 : f32 to vector<2x128xf32>
    %73 = vector.extract_strided_slice %64 {offsets = [0, 0], sizes = [1, 256], strides = [1, 1]} : vector<8x256xf32> to vector<1x256xf32>
    %74 = vector.extract_strided_slice %71 {offsets = [0, 0], sizes = [1, 256], strides = [1, 1]} : vector<8x256xf32> to vector<1x256xf32>
    %75 = tpu.concatenate %73, %74 in 0 : vector<1x256xf32>, vector<1x256xf32> -> vector<2x256xf32>
    %c0_16 = arith.constant 0 : index
    %c0_17 = arith.constant 0 : index
    %c0_18 = arith.constant 0 : index
    %76 = vector.load %arg7[%c0_16, %c0_17, %c0_18] : memref<8x256x128xf32, #tpu.memory_space<vmem>>, vector<1x256x128xf32>
    %77 = vector.shape_cast %76 : vector<1x256x128xf32> to vector<256x128xf32>
    %cst_19 = arith.constant dense<0.000000e+00> : vector<2x128xf32>
    %78 = tpu.matmul %75, %77, %cst_19 {dimension_numbers = #tpu.dot_dimension_numbers<[1], [0], [0], [1], [0, 0, 1, 1], [], []>} : vector<2x256xf32>, vector<256x128xf32>, vector<2x128xf32> -> vector<2x128xf32>
    %79 = arith.addf %72, %78 : vector<2x128xf32>
    %80 = vector.extract_strided_slice %64 {offsets = [1, 0], sizes = [1, 256], strides = [1, 1]} : vector<8x256xf32> to vector<1x256xf32>
    %81 = vector.extract_strided_slice %71 {offsets = [1, 0], sizes = [1, 256], strides = [1, 1]} : vector<8x256xf32> to vector<1x256xf32>
    %82 = tpu.concatenate %80, %81 in 0 : vector<1x256xf32>, vector<1x256xf32> -> vector<2x256xf32>
    %c1 = arith.constant 1 : index
    %c0_20 = arith.constant 0 : index
    %c0_21 = arith.constant 0 : index
    %83 = vector.load %arg7[%c1, %c0_20, %c0_21] : memref<8x256x128xf32, #tpu.memory_space<vmem>>, vector<1x256x128xf32>
    %84 = vector.shape_cast %83 : vector<1x256x128xf32> to vector<256x128xf32>
    %cst_22 = arith.constant dense<0.000000e+00> : vector<2x128xf32>
    %85 = tpu.matmul %82, %84, %cst_22 {dimension_numbers = #tpu.dot_dimension_numbers<[1], [0], [0], [1], [0, 0, 1, 1], [], []>} : vector<2x256xf32>, vector<256x128xf32>, vector<2x128xf32> -> vector<2x128xf32>
    %86 = arith.addf %79, %85 : vector<2x128xf32>
    %87 = vector.extract_strided_slice %64 {offsets = [2, 0], sizes = [1, 256], strides = [1, 1]} : vector<8x256xf32> to vector<1x256xf32>
    %88 = vector.extract_strided_slice %71 {offsets = [2, 0], sizes = [1, 256], strides = [1, 1]} : vector<8x256xf32> to vector<1x256xf32>
    %89 = tpu.concatenate %87, %88 in 0 : vector<1x256xf32>, vector<1x256xf32> -> vector<2x256xf32>
    %c2 = arith.constant 2 : index
    %c0_23 = arith.constant 0 : index
    %c0_24 = arith.constant 0 : index
    %90 = vector.load %arg7[%c2, %c0_23, %c0_24] : memref<8x256x128xf32, #tpu.memory_space<vmem>>, vector<1x256x128xf32>
    %91 = vector.shape_cast %90 : vector<1x256x128xf32> to vector<256x128xf32>
    %cst_25 = arith.constant dense<0.000000e+00> : vector<2x128xf32>
    %92 = tpu.matmul %89, %91, %cst_25 {dimension_numbers = #tpu.dot_dimension_numbers<[1], [0], [0], [1], [0, 0, 1, 1], [], []>} : vector<2x256xf32>, vector<256x128xf32>, vector<2x128xf32> -> vector<2x128xf32>
    %93 = arith.addf %86, %92 : vector<2x128xf32>
    %94 = vector.extract_strided_slice %64 {offsets = [3, 0], sizes = [1, 256], strides = [1, 1]} : vector<8x256xf32> to vector<1x256xf32>
    %95 = vector.extract_strided_slice %71 {offsets = [3, 0], sizes = [1, 256], strides = [1, 1]} : vector<8x256xf32> to vector<1x256xf32>
    %96 = tpu.concatenate %94, %95 in 0 : vector<1x256xf32>, vector<1x256xf32> -> vector<2x256xf32>
    %c3 = arith.constant 3 : index
    %c0_26 = arith.constant 0 : index
    %c0_27 = arith.constant 0 : index
    %97 = vector.load %arg7[%c3, %c0_26, %c0_27] : memref<8x256x128xf32, #tpu.memory_space<vmem>>, vector<1x256x128xf32>
    %98 = vector.shape_cast %97 : vector<1x256x128xf32> to vector<256x128xf32>
    %cst_28 = arith.constant dense<0.000000e+00> : vector<2x128xf32>
    %99 = tpu.matmul %96, %98, %cst_28 {dimension_numbers = #tpu.dot_dimension_numbers<[1], [0], [0], [1], [0, 0, 1, 1], [], []>} : vector<2x256xf32>, vector<256x128xf32>, vector<2x128xf32> -> vector<2x128xf32>
    %100 = arith.addf %93, %99 : vector<2x128xf32>
    %101 = vector.extract_strided_slice %64 {offsets = [4, 0], sizes = [1, 256], strides = [1, 1]} : vector<8x256xf32> to vector<1x256xf32>
    %102 = vector.extract_strided_slice %71 {offsets = [4, 0], sizes = [1, 256], strides = [1, 1]} : vector<8x256xf32> to vector<1x256xf32>
    %103 = tpu.concatenate %101, %102 in 0 : vector<1x256xf32>, vector<1x256xf32> -> vector<2x256xf32>
    %c4 = arith.constant 4 : index
    %c0_29 = arith.constant 0 : index
    %c0_30 = arith.constant 0 : index
    %104 = vector.load %arg7[%c4, %c0_29, %c0_30] : memref<8x256x128xf32, #tpu.memory_space<vmem>>, vector<1x256x128xf32>
    %105 = vector.shape_cast %104 : vector<1x256x128xf32> to vector<256x128xf32>
    %cst_31 = arith.constant dense<0.000000e+00> : vector<2x128xf32>
    %106 = tpu.matmul %103, %105, %cst_31 {dimension_numbers = #tpu.dot_dimension_numbers<[1], [0], [0], [1], [0, 0, 1, 1], [], []>} : vector<2x256xf32>, vector<256x128xf32>, vector<2x128xf32> -> vector<2x128xf32>
    %107 = arith.addf %100, %106 : vector<2x128xf32>
    %108 = vector.extract_strided_slice %64 {offsets = [5, 0], sizes = [1, 256], strides = [1, 1]} : vector<8x256xf32> to vector<1x256xf32>
    %109 = vector.extract_strided_slice %71 {offsets = [5, 0], sizes = [1, 256], strides = [1, 1]} : vector<8x256xf32> to vector<1x256xf32>
    %110 = tpu.concatenate %108, %109 in 0 : vector<1x256xf32>, vector<1x256xf32> -> vector<2x256xf32>
    %c5 = arith.constant 5 : index
    %c0_32 = arith.constant 0 : index
    %c0_33 = arith.constant 0 : index
    %111 = vector.load %arg7[%c5, %c0_32, %c0_33] : memref<8x256x128xf32, #tpu.memory_space<vmem>>, vector<1x256x128xf32>
    %112 = vector.shape_cast %111 : vector<1x256x128xf32> to vector<256x128xf32>
    %cst_34 = arith.constant dense<0.000000e+00> : vector<2x128xf32>
    %113 = tpu.matmul %110, %112, %cst_34 {dimension_numbers = #tpu.dot_dimension_numbers<[1], [0], [0], [1], [0, 0, 1, 1], [], []>} : vector<2x256xf32>, vector<256x128xf32>, vector<2x128xf32> -> vector<2x128xf32>
    %114 = arith.addf %107, %113 : vector<2x128xf32>
    %115 = vector.extract_strided_slice %64 {offsets = [6, 0], sizes = [1, 256], strides = [1, 1]} : vector<8x256xf32> to vector<1x256xf32>
    %116 = vector.extract_strided_slice %71 {offsets = [6, 0], sizes = [1, 256], strides = [1, 1]} : vector<8x256xf32> to vector<1x256xf32>
    %117 = tpu.concatenate %115, %116 in 0 : vector<1x256xf32>, vector<1x256xf32> -> vector<2x256xf32>
    %c6 = arith.constant 6 : index
    %c0_35 = arith.constant 0 : index
    %c0_36 = arith.constant 0 : index
    %118 = vector.load %arg7[%c6, %c0_35, %c0_36] : memref<8x256x128xf32, #tpu.memory_space<vmem>>, vector<1x256x128xf32>
    %119 = vector.shape_cast %118 : vector<1x256x128xf32> to vector<256x128xf32>
    %cst_37 = arith.constant dense<0.000000e+00> : vector<2x128xf32>
    %120 = tpu.matmul %117, %119, %cst_37 {dimension_numbers = #tpu.dot_dimension_numbers<[1], [0], [0], [1], [0, 0, 1, 1], [], []>} : vector<2x256xf32>, vector<256x128xf32>, vector<2x128xf32> -> vector<2x128xf32>
    %121 = arith.addf %114, %120 : vector<2x128xf32>
    %122 = vector.extract_strided_slice %64 {offsets = [7, 0], sizes = [1, 256], strides = [1, 1]} : vector<8x256xf32> to vector<1x256xf32>
    %123 = vector.extract_strided_slice %71 {offsets = [7, 0], sizes = [1, 256], strides = [1, 1]} : vector<8x256xf32> to vector<1x256xf32>
    %124 = tpu.concatenate %122, %123 in 0 : vector<1x256xf32>, vector<1x256xf32> -> vector<2x256xf32>
    %c7 = arith.constant 7 : index
    %c0_38 = arith.constant 0 : index
    %c0_39 = arith.constant 0 : index
    %125 = vector.load %arg7[%c7, %c0_38, %c0_39] : memref<8x256x128xf32, #tpu.memory_space<vmem>>, vector<1x256x128xf32>
    %126 = vector.shape_cast %125 : vector<1x256x128xf32> to vector<256x128xf32>
    %cst_40 = arith.constant dense<0.000000e+00> : vector<2x128xf32>
    %127 = tpu.matmul %124, %126, %cst_40 {dimension_numbers = #tpu.dot_dimension_numbers<[1], [0], [0], [1], [0, 0, 1, 1], [], []>} : vector<2x256xf32>, vector<256x128xf32>, vector<2x128xf32> -> vector<2x128xf32>
    %128 = arith.addf %121, %127 : vector<2x128xf32>
    %c0_41 = arith.constant 0 : index
    %c0_42 = arith.constant 0 : index
    %129 = vector.load %arg8[%c0_41, %c0_42] : memref<1x128xf32, #tpu.memory_space<vmem>>, vector<1x128xf32>
    %130 = vector.broadcast %129 : vector<1x128xf32> to vector<2x128xf32>
    %131 = arith.addf %128, %130 : vector<2x128xf32>
    %c0_43 = arith.constant 0 : index
    %c0_44 = arith.constant 0 : index
    %c0_45 = arith.constant 0 : index
    %132 = vector.load %arg9[%c0_43, %c0_44, %c0_45] : memref<1x2x128xf32, #tpu.memory_space<vmem>>, vector<1x2x128xf32>
    %133 = vector.shape_cast %132 : vector<1x2x128xf32> to vector<2x128xf32>
    %134 = vector.shape_cast %131 : vector<2x128xf32> to vector<1x2x128xf32>
    tpu.vector_store %arg9[%c0_43, %c0_44, %c0_45], %134 {strides = array<i32>} : memref<1x2x128xf32, #tpu.memory_space<vmem>>, vector<1x2x128xf32>,
    return
  }
  func.func @transform_0(%arg0: i32) -> (i32, i32, i32) {
    %c0_i32 = arith.constant 0 : i32
    %c0_i32_0 = arith.constant 0 : i32
    %c0_i32_1 = arith.constant 0 : i32
    return %arg0, %c0_i32, %c0_i32_0 : i32, i32, i32
  }
  func.func @transform_1(%arg0: i32) -> (i32, i32) {
    %c0_i32 = arith.constant 0 : i32
    %c0_i32_0 = arith.constant 0 : i32
    %c0_i32_1 = arith.constant 0 : i32
    return %c0_i32, %c0_i32_0 : i32, i32
  }
  func.func @transform_2(%arg0: i32) -> (i32, i32) {
    %c0_i32 = arith.constant 0 : i32
    %c0_i32_0 = arith.constant 0 : i32
    %c0_i32_1 = arith.constant 0 : i32
    return %c0_i32, %c0_i32_0 : i32, i32
  }
  func.func @transform_3(%arg0: i32) -> (i32, i32) {
    %c0_i32 = arith.constant 0 : i32
    %c0_i32_0 = arith.constant 0 : i32
    %c0_i32_1 = arith.constant 0 : i32
    return %c0_i32, %c0_i32_0 : i32, i32
  }
  func.func @transform_4(%arg0: i32) -> (i32, i32) {
    %c0_i32 = arith.constant 0 : i32
    %c0_i32_0 = arith.constant 0 : i32
    %c0_i32_1 = arith.constant 0 : i32
    return %c0_i32, %c0_i32_0 : i32, i32
  }
  func.func @transform_5(%arg0: i32) -> (i32, i32) {
    %c0_i32 = arith.constant 0 : i32
    %c0_i32_0 = arith.constant 0 : i32
    %c0_i32_1 = arith.constant 0 : i32
    return %c0_i32, %c0_i32_0 : i32, i32
  }
  func.func @transform_6(%arg0: i32) -> (i32, i32, i32) {
    %c0_i32 = arith.constant 0 : i32
    %c0_i32_0 = arith.constant 0 : i32
    %c0_i32_1 = arith.constant 0 : i32
    %c0_i32_2 = arith.constant 0 : i32
    return %c0_i32, %c0_i32_0, %c0_i32_1 : i32, i32, i32
  }
  func.func @transform_7(%arg0: i32) -> (i32, i32) {
    %c0_i32 = arith.constant 0 : i32
    %c0_i32_0 = arith.constant 0 : i32
    %c0_i32_1 = arith.constant 0 : i32
    return %c0_i32, %c0_i32_0 : i32, i32
  }
  func.func @transform_8(%arg0: i32) -> (i32, i32, i32) {
    %c0_i32 = arith.constant 0 : i32
    %c0_i32_0 = arith.constant 0 : i32
    %c0_i32_1 = arith.constant 0 : i32
    return %arg0, %c0_i32, %c0_i32_0 : i32, i32, i32
  }
}

</mosaic_0001>

<llo_original>
// kernel: model_with_normalize.1
$region0: #{model_with_normalize.1}
  #allocation0 [shape = 'u32[]', space=smem, size = 0x4, offset = 0x4, fixed_abs, tag = 'smem constant byte address 0x4 - core index']
  #allocation1 [shape = 'u32[144,128]{1,0:T(1,128)}', space=vmem, size = 0x12000, scoped, tag = 'internal scratch']
  %s0 = inlined_call_operand.vmem [shape: f32[4,8,256], index: 0, kind: input, shape index: {}]
  %s1 = inlined_call_operand.vmem [shape: f32[8,1], index: 1, kind: input, shape index: {}]
  %s2 = inlined_call_operand.vmem [shape: f32[8,1], index: 2, kind: input, shape index: {}]
  %s3 = inlined_call_operand.vmem [shape: f32[9,256], index: 3, kind: input, shape index: {}]
  %s4 = inlined_call_operand.vmem [shape: f32[8,72], index: 4, kind: input, shape index: {}]
  %s5 = inlined_call_operand.vmem [shape: f32[8,1], index: 5, kind: input, shape index: {}]
  %s6 = inlined_call_operand.vmem [shape: f32[8,256,128], index: 6, kind: input, shape index: {}]
  %s7 = inlined_call_operand.vmem [shape: f32[1,128], index: 7, kind: input, shape index: {}]
  %s8 = inlined_call_operand.hbm [shape: f32[2,2,128], index: 8, kind: output, shape index: {}]
  %s9 = sld [smem:[#allocation0]]
  $region65: #{model_with_normalize.1} parent=0
    _
  %s11 = ssub.s32 1, %s9
  %s12 = scalar_select 0, %s11, %s9
  $region1: #{model_with_normalize.1} parent=0
    #allocation2 [shape = 'u8[2048]{0}', space=vmem, size = 0x800, scoped, tag = 'output window, operand 0']
    #allocation3 [shape = 's32[2]{0}', space=sflag, size = 0x8, scoped, tag = 'scoped memory for model_with_normalize.1']
    %13 = vsyncpa [#allocation3], 0
    %s14 = scalar_lea.sflag [#allocation3], 1
    %15 = vsyncpa %s14, 0
    loop: start=0, step=1, limit=4
    $region2: #{model_with_normalize.1} parent=1 // loop_pre_header
      _
    $region3: #{model_with_normalize.1} parent=1 // loop_header
      %s17 = sphi 0, %s21
      %p18 = scmp.ge.s32.totalorder %s17, 4
      %s27 = sphi 0, %s29
      %s30 = sphi 0, %s27
      %s31 = sphi 0, %s30
      %s47 = sphi 0, %s31
      %s51 = sphi 0, %s51
      %s53 = sphi 0, %s51
      %s54 = sphi 0, %s53
      %s68 = sphi 0, %s54
      %s72 = sphi 0, %s72
      %s74 = sphi 0, %s72
      %s75 = sphi 0, %s74
      %s89 = sphi 0, %s75
      %s93 = sphi 0, %s93
      %s95 = sphi 0, %s93
      %s96 = sphi 0, %s95
      %s110 = sphi 0, %s96
      %s114 = sphi 0, %s114
      %s116 = sphi 0, %s114
      %s117 = sphi 0, %s116
      %s131 = sphi 0, %s117
      %s135 = sphi 0, %s135
      %s137 = sphi 0, %s135
      %s138 = sphi 0, %s137
      %s152 = sphi 0, %s138
      %s156 = sphi 0, %s156
      %s158 = sphi 0, %s156
      %s159 = sphi 0, %s158
      %s173 = sphi 0, %s159
      %s177 = sphi 0, %s177
      %s179 = sphi 0, %s177
      %s180 = sphi 0, %s179
      %s194 = sphi 0, %s180
      %s200 = sphi 0, %s202
      %s203 = sphi 0, %s200
      %s204 = sphi 0, %s203
      %s220 = sphi 0, %s204
    $region4: #{model_with_normalize.1} parent=1 // loop_header_branch
      %20 = sbr.rel (%p18) target = $region8
    $region5: #{model_with_normalize.1} parent=1 // loop_body
      %s22 = ssub.s32 %s17, 1
      %s23 = ssub.s32 %s17, 2
      %s24 = sadd.s32 %s17, 1
      %s25 = ssub.s32 %s17, %s24
      %p26 = scmp.eq.s32.totalorder %s25, 0
      %s28 = sadd.s32 %s27, 1
      %s29 = scalar_select %p26, %s27, %s28
      %p32 = pneg %p26
      %p33 = scmp.eq.s32.totalorder %s17, 1
      %p34 = por %p32, %p33
      %p35 = scmp.ne.s32.totalorder %s27, %s30
      %p36 = scmp.eq.s32.totalorder %s17, 0
      %p37 = por %p35, %p36
      %p38 = scmp.ne.s32.totalorder %s27, %s30
      %p39 = scmp.eq.s32.totalorder %s22, 1
      %p40 = por %p38, %p39
      %p41 = scmp.ne.s32.totalorder %s30, %s31
      %p42 = scmp.eq.s32.totalorder %s22, 0
      %p43 = por %p41, %p42
      %p44 = scmp.ne.s32.totalorder %s30, %s31
      %p45 = scmp.eq.s32.totalorder %s23, 1
      %p46 = por %p44, %p45
      %p48 = scmp.ne.s32.totalorder %s31, %s47
      %p49 = scmp.eq.s32.totalorder %s23, 0
      %p50 = por %p48, %p49
      %s52 = sadd.s32 %s51, 1
      %p55 = scmp.eq.s32.totalorder %s17, 1
      %p56 = scmp.ne.s32.totalorder %s51, %s53
      %p57 = scmp.eq.s32.totalorder %s17, 0
      %p58 = por %p56, %p57
      %p59 = scmp.ne.s32.totalorder %s51, %s53
      %p60 = scmp.eq.s32.totalorder %s22, 1
      %p61 = por %p59, %p60
      %p62 = scmp.ne.s32.totalorder %s53, %s54
      %p63 = scmp.eq.s32.totalorder %s22, 0
      %p64 = por %p62, %p63
      %p65 = scmp.ne.s32.totalorder %s53, %s54
      %p66 = scmp.eq.s32.totalorder %s23, 1
      %p67 = por %p65, %p66
      %p69 = scmp.ne.s32.totalorder %s54, %s68
      %p70 = scmp.eq.s32.totalorder %s23, 0
      %p71 = por %p69, %p70
      %s73 = sadd.s32 %s72, 1
      %p76 = scmp.eq.s32.totalorder %s17, 1
      %p77 = scmp.ne.s32.totalorder %s72, %s74
      %p78 = scmp.eq.s32.totalorder %s17, 0
      %p79 = por %p77, %p78
      %p80 = scmp.ne.s32.totalorder %s72, %s74
      %p81 = scmp.eq.s32.totalorder %s22, 1
      %p82 = por %p80, %p81
      %p83 = scmp.ne.s32.totalorder %s74, %s75
      %p84 = scmp.eq.s32.totalorder %s22, 0
      %p85 = por %p83, %p84
      %p86 = scmp.ne.s32.totalorder %s74, %s75
      %p87 = scmp.eq.s32.totalorder %s23, 1
      %p88 = por %p86, %p87
      %p90 = scmp.ne.s32.totalorder %s75, %s89
      %p91 = scmp.eq.s32.totalorder %s23, 0
      %p92 = por %p90, %p91
      %s94 = sadd.s32 %s93, 1
      %p97 = scmp.eq.s32.totalorder %s17, 1
      %p98 = scmp.ne.s32.totalorder %s93, %s95
      %p99 = scmp.eq.s32.totalorder %s17, 0
      %p100 = por %p98, %p99
      %p101 = scmp.ne.s32.totalorder %s93, %s95
      %p102 = scmp.eq.s32.totalorder %s22, 1
      %p103 = por %p101, %p102
      %p104 = scmp.ne.s32.totalorder %s95, %s96
      %p105 = scmp.eq.s32.totalorder %s22, 0
      %p106 = por %p104, %p105
      %p107 = scmp.ne.s32.totalorder %s95, %s96
      %p108 = scmp.eq.s32.totalorder %s23, 1
      %p109 = por %p107, %p108
      %p111 = scmp.ne.s32.totalorder %s96, %s110
      %p112 = scmp.eq.s32.totalorder %s23, 0
      %p113 = por %p111, %p112
      %s115 = sadd.s32 %s114, 1
      %p118 = scmp.eq.s32.totalorder %s17, 1
      %p119 = scmp.ne.s32.totalorder %s114, %s116
      %p120 = scmp.eq.s32.totalorder %s17, 0
      %p121 = por %p119, %p120
      %p122 = scmp.ne.s32.totalorder %s114, %s116
      %p123 = scmp.eq.s32.totalorder %s22, 1
      %p124 = por %p122, %p123
      %p125 = scmp.ne.s32.totalorder %s116, %s117
      %p126 = scmp.eq.s32.totalorder %s22, 0
      %p127 = por %p125, %p126
      %p128 = scmp.ne.s32.totalorder %s116, %s117
      %p129 = scmp.eq.s32.totalorder %s23, 1
      %p130 = por %p128, %p129
      %p132 = scmp.ne.s32.totalorder %s117, %s131
      %p133 = scmp.eq.s32.totalorder %s23, 0
      %p134 = por %p132, %p133
      %s136 = sadd.s32 %s135, 1
      %p139 = scmp.eq.s32.totalorder %s17, 1
      %p140 = scmp.ne.s32.totalorder %s135, %s137
      %p141 = scmp.eq.s32.totalorder %s17, 0
      %p142 = por %p140, %p141
      %p143 = scmp.ne.s32.totalorder %s135, %s137
      %p144 = scmp.eq.s32.totalorder %s22, 1
      %p145 = por %p143, %p144
      %p146 = scmp.ne.s32.totalorder %s137, %s138
      %p147 = scmp.eq.s32.totalorder %s22, 0
      %p148 = por %p146, %p147
      %p149 = scmp.ne.s32.totalorder %s137, %s138
      %p150 = scmp.eq.s32.totalorder %s23, 1
      %p151 = por %p149, %p150
      %p153 = scmp.ne.s32.totalorder %s138, %s152
      %p154 = scmp.eq.s32.totalorder %s23, 0
      %p155 = por %p153, %p154
      %s157 = sadd.s32 %s156, 1
      %p160 = scmp.eq.s32.totalorder %s17, 1
      %p161 = scmp.ne.s32.totalorder %s156, %s158
      %p162 = scmp.eq.s32.totalorder %s17, 0
      %p163 = por %p161, %p162
      %p164 = scmp.ne.s32.totalorder %s156, %s158
      %p165 = scmp.eq.s32.totalorder %s22, 1
      %p166 = por %p164, %p165
      %p167 = scmp.ne.s32.totalorder %s158, %s159
      %p168 = scmp.eq.s32.totalorder %s22, 0
      %p169 = por %p167, %p168
      %p170 = scmp.ne.s32.totalorder %s158, %s159
      %p171 = scmp.eq.s32.totalorder %s23, 1
      %p172 = por %p170, %p171
      %p174 = scmp.ne.s32.totalorder %s159, %s173
      %p175 = scmp.eq.s32.totalorder %s23, 0
      %p176 = por %p174, %p175
      %s178 = sadd.s32 %s177, 1
      %p181 = scmp.eq.s32.totalorder %s17, 1
      %p182 = scmp.ne.s32.totalorder %s177, %s179
      %p183 = scmp.eq.s32.totalorder %s17, 0
      %p184 = por %p182, %p183
      %p185 = scmp.ne.s32.totalorder %s177, %s179
      %p186 = scmp.eq.s32.totalorder %s22, 1
      %p187 = por %p185, %p186
      %p188 = scmp.ne.s32.totalorder %s179, %s180
      %p189 = scmp.eq.s32.totalorder %s22, 0
      %p190 = por %p188, %p189
      %p191 = scmp.ne.s32.totalorder %s179, %s180
      %p192 = scmp.eq.s32.totalorder %s23, 1
      %p193 = por %p191, %p192
      %p195 = scmp.ne.s32.totalorder %s180, %s194
      %p196 = scmp.eq.s32.totalorder %s23, 0
      %p197 = por %p195, %p196
      %s198 = ssub.s32 %s17, %s24
      %p199 = scmp.eq.s32.totalorder %s198, 0
      %s201 = sadd.s32 %s200, 1
      %s202 = scalar_select %p199, %s200, %s201
      %p205 = pneg %p199
      %p206 = scmp.eq.s32.totalorder %s17, 1
      %p207 = por %p205, %p206
      %p208 = scmp.ne.s32.totalorder %s200, %s203
      %p209 = scmp.eq.s32.totalorder %s17, 0
      %p210 = por %p208, %p209
      %p211 = scmp.ne.s32.totalorder %s200, %s203
      %p212 = scmp.eq.s32.totalorder %s22, 1
      %p213 = por %p211, %p212
      %p214 = scmp.ne.s32.totalorder %s203, %s204
      %p215 = scmp.eq.s32.totalorder %s22, 0
      %p216 = por %p214, %p215
      %p217 = scmp.ne.s32.totalorder %s203, %s204
      %p218 = scmp.eq.s32.totalorder %s23, 1
      %p219 = por %p217, %p218
      %p221 = scmp.ne.s32.totalorder %s204, %s220
      %p222 = scmp.eq.s32.totalorder %s23, 0
      %p223 = por %p221, %p222
      %p224 = scmp.le.s32.totalorder 1, %s17
      %p225 = scmp.lt.s32.totalorder %s17, 3
      %p226 = pnand %p224, %p225
      %p227 = pneg %p226
      // Predicated region
      $region9: #{model_with_normalize.1} parent=5 // pred_check
        _
      $region10: #{model_with_normalize.1} parent=5 // pred_check_branch
        %229 = sbr.rel (%p226) target = $region12
      $region11: #{model_with_normalize.1} parent=5 // pred_region
        %s230 = ssub.s32 %s17, 1
        // Predicated region
        $region13: #{model_with_normalize.1} parent=11 // pred_check
          %p231 = pneg %p64
        $region14: #{model_with_normalize.1} parent=11 // pred_check_branch
          %233 = sbr.rel (%p231) target = $region16
        $region15: #{model_with_normalize.1} parent=11 // pred_region
          _
        $region16: #{model_with_normalize.1} parent=11 // pred_fallthru
          _
        // Predicated region
        $region17: #{model_with_normalize.1} parent=11 // pred_check
          %p234 = pneg %p85
        $region18: #{model_with_normalize.1} parent=11 // pred_check_branch
          %236 = sbr.rel (%p234) target = $region20
        $region19: #{model_with_normalize.1} parent=11 // pred_region
          _
        $region20: #{model_with_normalize.1} parent=11 // pred_fallthru
          _
        // Predicated region
        $region21: #{model_with_normalize.1} parent=11 // pred_check
          %p237 = pneg %p106
        $region22: #{model_with_normalize.1} parent=11 // pred_check_branch
          %239 = sbr.rel (%p237) target = $region24
        $region23: #{model_with_normalize.1} parent=11 // pred_region
          _
        $region24: #{model_with_normalize.1} parent=11 // pred_fallthru
          _
        // Predicated region
        $region25: #{model_with_normalize.1} parent=11 // pred_check
          %p240 = pneg %p127
        $region26: #{model_with_normalize.1} parent=11 // pred_check_branch
          %242 = sbr.rel (%p240) target = $region28
        $region27: #{model_with_normalize.1} parent=11 // pred_region
          _
        $region28: #{model_with_normalize.1} parent=11 // pred_fallthru
          _
        // Predicated region
        $region29: #{model_with_normalize.1} parent=11 // pred_check
          %p243 = pneg %p148
        $region30: #{model_with_normalize.1} parent=11 // pred_check_branch
          %245 = sbr.rel (%p243) target = $region32
        $region31: #{model_with_normalize.1} parent=11 // pred_region
          _
        $region32: #{model_with_normalize.1} parent=11 // pred_fallthru
          _
        // Predicated region
        $region33: #{model_with_normalize.1} parent=11 // pred_check
          %p246 = pneg %p169
        $region34: #{model_with_normalize.1} parent=11 // pred_check_branch
          %248 = sbr.rel (%p246) target = $region36
        $region35: #{model_with_normalize.1} parent=11 // pred_region
          _
        $region36: #{model_with_normalize.1} parent=11 // pred_fallthru
          _
        // Predicated region
        $region37: #{model_with_normalize.1} parent=11 // pred_check
          %p249 = pneg %p190
        $region38: #{model_with_normalize.1} parent=11 // pred_check_branch
          %251 = sbr.rel (%p249) target = $region40
        $region39: #{model_with_normalize.1} parent=11 // pred_region
          _
        $region40: #{model_with_normalize.1} parent=11 // pred_fallthru
          _
      $region12: #{model_with_normalize.1} parent=5 // pred_fallthru
        _
      %p252 = scmp.lt.s32.totalorder %s17, 2
      // Predicated region
      $region41: #{model_with_normalize.1} parent=5 // pred_check
        %p253 = pneg %p252
      $region42: #{model_with_normalize.1} parent=5 // pred_check_branch
        %255 = sbr.rel (%p253) target = $region44
      $region43: #{model_with_normalize.1} parent=5 // pred_region
        // Predicated region
        $region45: #{model_with_normalize.1} parent=43 // pred_check
          %p256 = pneg %p37
        $region46: #{model_with_normalize.1} parent=43 // pred_check_branch
          %258 = sbr.rel (%p256) target = $region48
        $region47: #{model_with_normalize.1} parent=43 // pred_region
          %s259 = smul.u32 2, %s17
          %p260 = scmp.lt.s32.totalorder %s259, 3
          %s261 = scalar_select %p260, %s259, 3
          %s262 = smul.addr %s261, 2
          %s263 = smul.addr %s262, 8
          %s264 = scalar_lea.vmem %s0, %s263
          %s265 = smul.u32 2, %s17
        $region48: #{model_with_normalize.1} parent=43 // pred_fallthru
          _
      $region44: #{model_with_normalize.1} parent=5 // pred_fallthru
        _
      %p266 = scmp.le.s32.totalorder 1, %s17
      %p267 = scmp.lt.s32.totalorder %s17, 3
      %p268 = pnand %p266, %p267
      %p269 = pneg %p268
      // Predicated region
      $region49: #{model_with_normalize.1} parent=5 // pred_check
        _
      $region50: #{model_with_normalize.1} parent=5 // pred_check_branch
        %271 = sbr.rel (%p268) target = $region52
      $region51: #{model_with_normalize.1} parent=5 // pred_region
        %s272 = ssub.s32 %s17, 1
        %s273 = smul.u32 2, %s22
        %p274 = scmp.lt.s32.totalorder %s273, 3
        %s275 = scalar_select %p274, %s273, 3
        %s276 = smul.addr %s275, 2
        %s277 = smul.addr %s276, 8
        %s278 = scalar_lea.vmem %s0, %s277
        %p279 = pneg %p43
        %p280 = pneg %p40
        %p281 = pneg %p64
        %p282 = pneg %p61
        %p283 = pneg %p85
        %p284 = pneg %p82
        %p285 = pneg %p106
        %p286 = pneg %p103
        %p287 = pneg %p127
        %p288 = pneg %p124
        %p289 = pneg %p148
        %p290 = pneg %p145
        %p291 = pneg %p169
        %p292 = pneg %p166
        %p293 = pneg %p190
        %p294 = pneg %p187
        %p295 = pneg %p216
        %p296 = pneg %p213
        %s297 = sand.u32 %s203, 1
        %s298 = scalar_lea.sflag [#allocation3], %s297
        %s299 = sand.u32 %s203, 1
        %s300 = smul.addr %s299, 2
        %s301 = scalar_lea.vmem [#allocation2], %s300
        %s302 = smul.u32 2, %s22
        %p303 = scmp.lt.s32.totalorder %s302, 3
        %s304 = scalar_select %p303, %s302, 3
        %s305 = smul.addr %s304, 2
        %s306 = smul.addr %s305, 8
        %s307 = scalar_lea.vmem %s0, %s306
        %s308 = smul.u32 2, %s22
        %v309 = vld [vmem:[%s307] sm:$0xff]
        %v310 = vld [vmem:[%s307 + $0x8] sm:$0xff]
        %v311 = vld [vmem:[%s307 + $0x10] sm:$0xff]
        %v312 = vld [vmem:[%s307 + $0x18] sm:$0xff]
        %v313 = vld [vmem:[%s1] sm:$0xff]
        %315 = vset.pattern.permute.xlu0 0
        %316 = vperm.xlu0 %315, %v313
        %v317 = vpop.permute.xlu0 %316
        %v319 = vmul.f32 %v309, %v317
        %v320 = vmul.f32 %v310, %v317
        %v321 = vmul.f32 %v311, %v317
        %v322 = vmul.f32 %v312, %v317
        %v323 = vld [vmem:[%s2] sm:$0xff]
        %325 = vset.pattern.permute.xlu0 0
        %326 = vperm.xlu0 %325, %v323
        %v327 = vpop.permute.xlu0 %326
        %v329 = vsub.f32 %v319, %v327
        %v330 = vsub.f32 %v320, %v327
        %v331 = vsub.f32 %v321, %v327
        %v332 = vsub.f32 %v322, %v327
        %v333 = vld [vmem:[%s3] sm:$0xff]
        %v334 = vld [vmem:[%s3 + $0x8] sm:$0xff]
        %v335 = vld [vmem:[%s3 + $0x10] sm:$0x1]
        %v336 = vld [vmem:[%s3 + $0x18] sm:$0x1]
        %337 = vrot.lane.b32.xlu0 %v329, 17
        %v338 = vpop.permute.xlu0 %337
        %339 = vrot.lane.b32.xlu0 %v331, 17
        %v340 = vpop.permute.xlu0 %339
        %341 = vrot.lane.b32.xlu0 %v330, 17
        %v342 = vpop.permute.xlu0 %341
        %343 = vrot.lane.b32.xlu0 %v332, 17
        %v344 = vpop.permute.xlu0 %343
        %v345 = vlaneseq
        %v346 = vand.u32 %v345, 127
        %vm347 = vcmp.lt.s32.totalorder %v346, 17
        %v348 = vsel %vm347, %v338, %v342
        %v349 = vsel %vm347, %v340, %v344
        %v350 = vsel %vm347, %v342, %v338
        %v351 = vsel %vm347, %v344, %v340
        %v352 = vlaneseq
        %v353 = vshrl.u32 %v352, 7
        %v354 = vsub.s32 0, %v353
        %v355 = vrot.slane %v333, %v354
        %v356 = vlaneseq
        %v357 = vshrl.u32 %v356, 7
        %v358 = vsub.s32 0, %v357
        %v359 = vrot.slane %v334, %v358
        %v360 = vmul.f32 %v350, %v355
        %v361 = vmul.f32 %v348, %v359
        %v362 = vmul.f32 %v351, %v355
        %v363 = vmul.f32 %v349, %v359
        %364 = vrot.lane.b32.xlu0 %v329, 16
        %v365 = vpop.permute.xlu0 %364
        %366 = vrot.lane.b32.xlu0 %v331, 16
        %v367 = vpop.permute.xlu0 %366
        %368 = vrot.lane.b32.xlu0 %v330, 16
        %v369 = vpop.permute.xlu0 %368
        %370 = vrot.lane.b32.xlu0 %v332, 16
        %v371 = vpop.permute.xlu0 %370
        %vm372 = vcmp.lt.s32.totalorder %v346, 16
        %v373 = vsel %vm372, %v365, %v369
        %v374 = vsel %vm372, %v367, %v371
        %v375 = vsel %vm372, %v369, %v365
        %v376 = vsel %vm372, %v371, %v367
        %v377 = vlaneseq
        %v378 = vshrl.u32 %v377, 7
        %v379 = vsub.s32 1, %v378
        %v380 = vrot.slane %v333, %v379
        %v381 = vlaneseq
        %v382 = vshrl.u32 %v381, 7
        %v383 = vsub.s32 1, %v382
        %v384 = vrot.slane %v334, %v383
        %v385 = vmul.f32 %v375, %v380
        %v386 = vmul.f32 %v373, %v384
        %v387 = vmul.f32 %v376, %v380
        %v388 = vmul.f32 %v374, %v384
        %389 = vrot.lane.b32.xlu0 %v329, 15
        %v390 = vpop.permute.xlu0 %389
        %391 = vrot.lane.b32.xlu0 %v331, 15
        %v392 = vpop.permute.xlu0 %391
        %393 = vrot.lane.b32.xlu0 %v330, 15
        %v394 = vpop.permute.xlu0 %393
        %395 = vrot.lane.b32.xlu0 %v332, 15
        %v396 = vpop.permute.xlu0 %395
        %vm397 = vcmp.lt.s32.totalorder %v346, 15
        %v398 = vsel %vm397, %v390, %v394
        %v399 = vsel %vm397, %v392, %v396
        %v400 = vsel %vm397, %v394, %v390
        %v401 = vsel %vm397, %v396, %v392
        %v402 = vlaneseq
        %v403 = vshrl.u32 %v402, 7
        %v404 = vsub.s32 2, %v403
        %v405 = vrot.slane %v333, %v404
        %v406 = vlaneseq
        %v407 = vshrl.u32 %v406, 7
        %v408 = vsub.s32 2, %v407
        %v409 = vrot.slane %v334, %v408
        %v410 = vmul.f32 %v400, %v405
        %v411 = vmul.f32 %v398, %v409
        %v412 = vmul.f32 %v401, %v405
        %v413 = vmul.f32 %v399, %v409
        %414 = vrot.lane.b32.xlu0 %v329, 1
        %v415 = vpop.permute.xlu0 %414
        %416 = vrot.lane.b32.xlu0 %v331, 1
        %v417 = vpop.permute.xlu0 %416
        %418 = vrot.lane.b32.xlu0 %v330, 1
        %v419 = vpop.permute.xlu0 %418
        %420 = vrot.lane.b32.xlu0 %v332, 1
        %v421 = vpop.permute.xlu0 %420
        %vm422 = vcmp.lt.s32.totalorder %v346, 1
        %v423 = vsel %vm422, %v415, %v419
        %v424 = vsel %vm422, %v417, %v421
        %v425 = vsel %vm422, %v419, %v415
        %v426 = vsel %vm422, %v421, %v417
        %v427 = vlaneseq
        %v428 = vshrl.u32 %v427, 7
        %v429 = vsub.s32 3, %v428
        %v430 = vrot.slane %v333, %v429
        %v431 = vlaneseq
        %v432 = vshrl.u32 %v431, 7
        %v433 = vsub.s32 3, %v432
        %v434 = vrot.slane %v334, %v433
        %v435 = vmul.f32 %v425, %v430
        %v436 = vmul.f32 %v423, %v434
        %v437 = vmul.f32 %v426, %v430
        %v438 = vmul.f32 %v424, %v434
        %v439 = vlaneseq
        %v440 = vshrl.u32 %v439, 7
        %v441 = vsub.s32 4, %v440
        %v442 = vrot.slane %v333, %v441
        %v443 = vlaneseq
        %v444 = vshrl.u32 %v443, 7
        %v445 = vsub.s32 4, %v444
        %v446 = vrot.slane %v334, %v445
        %v447 = vmul.f32 %v329, %v442
        %v448 = vmul.f32 %v330, %v446
        %v449 = vmul.f32 %v331, %v442
        %v450 = vmul.f32 %v332, %v446
        %451 = vrot.lane.b32.xlu0 %v329, 127
        %v452 = vpop.permute.xlu0 %451
        %453 = vrot.lane.b32.xlu0 %v331, 127
        %v454 = vpop.permute.xlu0 %453
        %455 = vrot.lane.b32.xlu0 %v330, 127
        %v456 = vpop.permute.xlu0 %455
        %457 = vrot.lane.b32.xlu0 %v332, 127
        %v458 = vpop.permute.xlu0 %457
        %vm459 = vcmp.lt.s32.totalorder %v346, 127
        %v460 = vsel %vm459, %v452, %v456
        %v461 = vsel %vm459, %v454, %v458
        %v462 = vsel %vm459, %v456, %v452
        %v463 = vsel %vm459, %v458, %v454
        %v464 = vlaneseq
        %v465 = vshrl.u32 %v464, 7
        %v466 = vsub.s32 5, %v465
        %v467 = vrot.slane %v333, %v466
        %v468 = vlaneseq
        %v469 = vshrl.u32 %v468, 7
        %v470 = vsub.s32 5, %v469
        %v471 = vrot.slane %v334, %v470
        %v472 = vmul.f32 %v460, %v467
        %v473 = vmul.f32 %v462, %v471
        %v474 = vmul.f32 %v461, %v467
        %v475 = vmul.f32 %v463, %v471
        %476 = vrot.lane.b32.xlu0 %v329, 113
        %v477 = vpop.permute.xlu0 %476
        %478 = vrot.lane.b32.xlu0 %v331, 113
        %v479 = vpop.permute.xlu0 %478
        %480 = vrot.lane.b32.xlu0 %v330, 113
        %v481 = vpop.permute.xlu0 %480
        %482 = vrot.lane.b32.xlu0 %v332, 113
        %v483 = vpop.permute.xlu0 %482
        %vm484 = vcmp.lt.s32.totalorder %v346, 113
        %v485 = vsel %vm484, %v477, %v481
        %v486 = vsel %vm484, %v479, %v483
        %v487 = vsel %vm484, %v481, %v477
        %v488 = vsel %vm484, %v483, %v479
        %v489 = vlaneseq
        %v490 = vshrl.u32 %v489, 7
        %v491 = vsub.s32 6, %v490
        %v492 = vrot.slane %v333, %v491
        %v493 = vlaneseq
        %v494 = vshrl.u32 %v493, 7
        %v495 = vsub.s32 6, %v494
        %v496 = vrot.slane %v334, %v495
        %v497 = vmul.f32 %v485, %v492
        %v498 = vmul.f32 %v487, %v496
        %v499 = vmul.f32 %v486, %v492
        %v500 = vmul.f32 %v488, %v496
        %501 = vrot.lane.b32.xlu0 %v329, 112
        %v502 = vpop.permute.xlu0 %501
        %503 = vrot.lane.b32.xlu0 %v331, 112
        %v504 = vpop.permute.xlu0 %503
        %505 = vrot.lane.b32.xlu0 %v330, 112
        %v506 = vpop.permute.xlu0 %505
        %507 = vrot.lane.b32.xlu0 %v332, 112
        %v508 = vpop.permute.xlu0 %507
        %vm509 = vcmp.lt.s32.totalorder %v346, 112
        %v510 = vsel %vm509, %v502, %v506
        %v511 = vsel %vm509, %v504, %v508
        %v512 = vsel %vm509, %v506, %v502
        %v513 = vsel %vm509, %v508, %v504
        %v514 = vlaneseq
        %v515 = vshrl.u32 %v514, 7
        %v516 = vsub.s32 7, %v515
        %v517 = vrot.slane %v333, %v516
        %v518 = vlaneseq
        %v519 = vshrl.u32 %v518, 7
        %v520 = vsub.s32 7, %v519
        %v521 = vrot.slane %v334, %v520
        %v522 = vmul.f32 %v510, %v517
        %v523 = vmul.f32 %v512, %v521
        %v524 = vmul.f32 %v511, %v517
        %v525 = vmul.f32 %v513, %v521
        %526 = vrot.lane.b32.xlu0 %v329, 111
        %v527 = vpop.permute.xlu0 %526
        %528 = vrot.lane.b32.xlu0 %v331, 111
        %v529 = vpop.permute.xlu0 %528
        %530 = vrot.lane.b32.xlu0 %v330, 111
        %v531 = vpop.permute.xlu0 %530
        %532 = vrot.lane.b32.xlu0 %v332, 111
        %v533 = vpop.permute.xlu0 %532
        %vm534 = vcmp.lt.s32.totalorder %v346, 111
        %v535 = vsel %vm534, %v527, %v531
        %v536 = vsel %vm534, %v529, %v533
        %v537 = vsel %vm534, %v531, %v527
        %v538 = vsel %vm534, %v533, %v529
        %v539 = vlaneseq
        %v540 = vshrl.u32 %v539, 7
        %v541 = vsub.s32 0, %v540
        %v542 = vrot.slane %v335, %v541
        %v543 = vlaneseq
        %v544 = vshrl.u32 %v543, 7
        %v545 = vsub.s32 0, %v544
        %v546 = vrot.slane %v336, %v545
        %v547 = vmul.f32 %v535, %v542
        %v548 = vmul.f32 %v537, %v546
        %v549 = vmul.f32 %v536, %v542
        %v550 = vmul.f32 %v538, %v546
        %v551 = vld [vmem:[%s4] sm:$0xff]
        %v552 = vld [vmem:[%s5] sm:$0xff]
        %554 = vset.pattern.permute.xlu0 0
        %555 = vperm.xlu0 %554, %v552
        %v556 = vpop.permute.xlu0 %555
        %vm558 = vcmask 588800
        %v560 = vsel %vm558, %v551, 0
        %562 = vmatprep.subr.mxu0 %v361
        %563 = vmatpush1.msra.mxu0 %v360
        %564 = vmatprep.subr.mxu0 %v386
        %565 = vmatpush1.msra.mxu0 %v385
        %566 = vmatprep.subr.mxu0 %v411
        %567 = vmatpush1.msra.mxu0 %v410
        %568 = vmatprep.subr.mxu0 %v436
        %569 = vmatpush1.msra.mxu0 %v435
        %570 = vmatprep.subr.mxu0 %v448
        %571 = vmatpush1.msra.mxu0 %v447
        %572 = vmatprep.subr.mxu0 %v473
        %573 = vmatpush1.msra.mxu0 %v472
        %574 = vmatprep.subr.mxu0 %v498
        %575 = vmatpush1.msra.mxu0 %v497
        %576 = vmatprep.subr.mxu0 %v523
        %577 = vmatpush1.msra.mxu0 %v522
        %578 = vmatprep.subr.mxu0 %v548
        %579 = vmatpush1.msra.mxu0 %v547
        %580 = vmatprep.subr.mxu0 0.0
        %581 = vmatpush1.msra.mxu0 0.0
        %582 = vmatprep.subr.mxu0 0.0
        %583 = vmatpush1.msra.mxu0 0.0
        %584 = vmatprep.subr.mxu0 0.0
        %585 = vmatpush1.msra.mxu0 0.0
        %586 = vmatprep.subr.mxu0 0.0
        %587 = vmatpush1.msra.mxu0 0.0
        %588 = vmatprep.subr.mxu0 0.0
        %589 = vmatpush1.msra.mxu0 0.0
        %590 = vmatprep.subr.mxu0 0.0
        %591 = vmatpush1.msra.mxu0 0.0
        %592 = vmatprep.subr.mxu0 0.0
        %593 = vmatpush1.msra.mxu0 0.0
        %594 = vmatprep.subr.mxu0 0.0
        %595 = vmatpush1.msra.mxu0 0.0
        %596 = vmatprep.subr.mxu0 0.0
        %597 = vmatpush1.msra.mxu0 0.0
        %598 = vmatprep.subr.mxu0 0.0
        %599 = vmatpush1.msra.mxu0 0.0
        %600 = vmatprep.subr.mxu0 0.0
        %601 = vmatpush1.msra.mxu0 0.0
        %602 = vmatprep.subr.mxu0 0.0
        %603 = vmatpush1.msra.mxu0 0.0
        %604 = vmatprep.subr.mxu0 0.0
        %605 = vmatpush1.msra.mxu0 0.0
        %606 = vmatprep.subr.mxu0 0.0
        %607 = vmatpush1.msra.mxu0 0.0
        %608 = vmatprep.subr.mxu0 0.0
        %609 = vmatpush1.msra.mxu0 0.0
        %610 = vmatprep.subr.mxu0 0.0
        %611 = vmatpush1.msra.mxu0 0.0
        %612 = vmatprep.subr.mxu0 0.0
        %613 = vmatpush1.msra.mxu0 0.0
        %614 = vmatprep.subr.mxu0 0.0
        %615 = vmatpush1.msra.mxu0 0.0
        %616 = vmatprep.subr.mxu0 0.0
        %617 = vmatpush1.msra.mxu0 0.0
        %618 = vmatprep.subr.mxu0 0.0
        %619 = vmatpush1.msra.mxu0 0.0
        %620 = vmatprep.subr.mxu0 0.0
        %621 = vmatpush1.msra.mxu0 0.0
        %622 = vmatprep.subr.mxu0 0.0
        %623 = vmatpush1.msra.mxu0 0.0
        %624 = vmatprep.subr.mxu0 0.0
        %625 = vmatpush1.msra.mxu0 0.0
        %626 = vmatprep.mubr.f32.mxu0 0.0
        %627 = vmatmul.mubr.f32.gmra.mrb[0].mxu0 %v560
        %v628 = vpop.f32.mrb[0].mxu0
        %v629 = vadd.f32 %v556, %v628
        %v630 = vpop.f32.mrb[0].mxu0
        %v631 = vadd.f32 %v556, %v630
        %632 = vdwg.mxu0
        %v633 = vmax.f32 %v629, 0.0
        %v634 = vmax.f32 %v631, 0.0
        %635 = vmatprep.subr.mxu0 %v363
        %636 = vmatpush1.msra.mxu0 %v362
        %637 = vmatprep.subr.mxu0 %v388
        %638 = vmatpush1.msra.mxu0 %v387
        %639 = vmatprep.subr.mxu0 %v413
        %640 = vmatpush1.msra.mxu0 %v412
        %641 = vmatprep.subr.mxu0 %v438
        %642 = vmatpush1.msra.mxu0 %v437
        %643 = vmatprep.subr.mxu0 %v450
        %644 = vmatpush1.msra.mxu0 %v449
        %645 = vmatprep.subr.mxu0 %v475
        %646 = vmatpush1.msra.mxu0 %v474
        %647 = vmatprep.subr.mxu0 %v500
        %648 = vmatpush1.msra.mxu0 %v499
        %649 = vmatprep.subr.mxu0 %v525
        %650 = vmatpush1.msra.mxu0 %v524
        %651 = vmatprep.subr.mxu0 %v550
        %652 = vmatpush1.msra.mxu0 %v549
        %653 = vmatprep.subr.mxu0 0.0
        %654 = vmatpush1.msra.mxu0 0.0
        %655 = vmatprep.subr.mxu0 0.0
        %656 = vmatpush1.msra.mxu0 0.0
        %657 = vmatprep.subr.mxu0 0.0
        %658 = vmatpush1.msra.mxu0 0.0
        %659 = vmatprep.subr.mxu0 0.0
        %660 = vmatpush1.msra.mxu0 0.0
        %661 = vmatprep.subr.mxu0 0.0
        %662 = vmatpush1.msra.mxu0 0.0
        %663 = vmatprep.subr.mxu0 0.0
        %664 = vmatpush1.msra.mxu0 0.0
        %665 = vmatprep.subr.mxu0 0.0
        %666 = vmatpush1.msra.mxu0 0.0
        %667 = vmatprep.subr.mxu0 0.0
        %668 = vmatpush1.msra.mxu0 0.0
        %669 = vmatprep.subr.mxu0 0.0
        %670 = vmatpush1.msra.mxu0 0.0
        %671 = vmatprep.subr.mxu0 0.0
        %672 = vmatpush1.msra.mxu0 0.0
        %673 = vmatprep.subr.mxu0 0.0
        %674 = vmatpush1.msra.mxu0 0.0
        %675 = vmatprep.subr.mxu0 0.0
        %676 = vmatpush1.msra.mxu0 0.0
        %677 = vmatprep.subr.mxu0 0.0
        %678 = vmatpush1.msra.mxu0 0.0
        %679 = vmatprep.subr.mxu0 0.0
        %680 = vmatpush1.msra.mxu0 0.0
        %681 = vmatprep.subr.mxu0 0.0
        %682 = vmatpush1.msra.mxu0 0.0
        %683 = vmatprep.subr.mxu0 0.0
        %684 = vmatpush1.msra.mxu0 0.0
        %685 = vmatprep.subr.mxu0 0.0
        %686 = vmatpush1.msra.mxu0 0.0
        %687 = vmatprep.subr.mxu0 0.0
        %688 = vmatpush1.msra.mxu0 0.0
        %689 = vmatprep.subr.mxu0 0.0
        %690 = vmatpush1.msra.mxu0 0.0
        %691 = vmatprep.subr.mxu0 0.0
        %692 = vmatpush1.msra.mxu0 0.0
        %693 = vmatprep.subr.mxu0 0.0
        %694 = vmatpush1.msra.mxu0 0.0
        %695 = vmatprep.subr.mxu0 0.0
        %696 = vmatpush1.msra.mxu0 0.0
        %697 = vmatprep.subr.mxu0 0.0
        %698 = vmatpush1.msra.mxu0 0.0
        %699 = vmatprep.mubr.f32.mxu0 0.0
        %700 = vmatmul.mubr.f32.gmra.mrb[0].mxu0 %v560
        %v701 = vpop.f32.mrb[0].mxu0
        %v702 = vadd.f32 %v556, %v701
        %v703 = vpop.f32.mrb[0].mxu0
        %v704 = vadd.f32 %v556, %v703
        %705 = vdwg.mxu0
        %v706 = vmax.f32 %v702, 0.0
        %v707 = vmax.f32 %v704, 0.0
        %v710 = vrot.slane %v706, 7
        %v711 = vrot.slane %v707, 7
        %vm714 = vcmask 1040384
        %v715 = vsel %vm714, %v633, %v710
        %v716 = vsel %vm714, %v634, %v711
        %v717 = vld [vmem:[%s6] sm:$0xff]
        %v718 = vld [vmem:[%s6 + $0x8] sm:$0xff]
        %v719 = vld [vmem:[%s6 + $0x10] sm:$0xff]
        %v720 = vld [vmem:[%s6 + $0x18] sm:$0xff]
        %v721 = vld [vmem:[%s6 + $0x20] sm:$0xff]
        %v722 = vld [vmem:[%s6 + $0x28] sm:$0xff]
        %v723 = vld [vmem:[%s6 + $0x30] sm:$0xff]
        %v724 = vld [vmem:[%s6 + $0x38] sm:$0xff]
        %v725 = vld [vmem:[%s6 + $0x40] sm:$0xff]
        %v726 = vld [vmem:[%s6 + $0x48] sm:$0xff]
        %v727 = vld [vmem:[%s6 + $0x50] sm:$0xff]
        %v728 = vld [vmem:[%s6 + $0x58] sm:$0xff]
        %v729 = vld [vmem:[%s6 + $0x60] sm:$0xff]
        %v730 = vld [vmem:[%s6 + $0x68] sm:$0xff]
        %v731 = vld [vmem:[%s6 + $0x70] sm:$0xff]
        %v732 = vld [vmem:[%s6 + $0x78] sm:$0xff]
        %v733 = vld [vmem:[%s6 + $0x80] sm:$0xff]
        %v734 = vld [vmem:[%s6 + $0x88] sm:$0xff]
        %v735 = vld [vmem:[%s6 + $0x90] sm:$0xff]
        %v736 = vld [vmem:[%s6 + $0x98] sm:$0xff]
        %v737 = vld [vmem:[%s6 + $0xa0] sm:$0xff]
        %v738 = vld [vmem:[%s6 + $0xa8] sm:$0xff]
        %v739 = vld [vmem:[%s6 + $0xb0] sm:$0xff]
        %v740 = vld [vmem:[%s6 + $0xb8] sm:$0xff]
        %v741 = vld [vmem:[%s6 + $0xc0] sm:$0xff]
        %v742 = vld [vmem:[%s6 + $0xc8] sm:$0xff]
        %v743 = vld [vmem:[%s6 + $0xd0] sm:$0xff]
        %v744 = vld [vmem:[%s6 + $0xd8] sm:$0xff]
        %v745 = vld [vmem:[%s6 + $0xe0] sm:$0xff]
        %v746 = vld [vmem:[%s6 + $0xe8] sm:$0xff]
        %v747 = vld [vmem:[%s6 + $0xf0] sm:$0xff]
        %v748 = vld [vmem:[%s6 + $0xf8] sm:$0xff]
        %v751 = vrot.slane %v633, 1
        %v752 = vrot.slane %v634, 1
        %v755 = vsel %vm714, %v751, %v706
        %v756 = vsel %vm714, %v752, %v707
        %s757 = scalar_lea.vmem %s6, 256
        %v758 = vld [vmem:[%s757] sm:$0xff]
        %v759 = vld [vmem:[%s757 + $0x8] sm:$0xff]
        %v760 = vld [vmem:[%s757 + $0x10] sm:$0xff]
        %v761 = vld [vmem:[%s757 + $0x18] sm:$0xff]
        %v762 = vld [vmem:[%s757 + $0x20] sm:$0xff]
        %v763 = vld [vmem:[%s757 + $0x28] sm:$0xff]
        %v764 = vld [vmem:[%s757 + $0x30] sm:$0xff]
        %v765 = vld [vmem:[%s757 + $0x38] sm:$0xff]
        %v766 = vld [vmem:[%s757 + $0x40] sm:$0xff]
        %v767 = vld [vmem:[%s757 + $0x48] sm:$0xff]
        %v768 = vld [vmem:[%s757 + $0x50] sm:$0xff]
        %v769 = vld [vmem:[%s757 + $0x58] sm:$0xff]
        %v770 = vld [vmem:[%s757 + $0x60] sm:$0xff]
        %v771 = vld [vmem:[%s757 + $0x68] sm:$0xff]
        %v772 = vld [vmem:[%s757 + $0x70] sm:$0xff]
        %v773 = vld [vmem:[%s757 + $0x78] sm:$0xff]
        %v774 = vld [vmem:[%s757 + $0x80] sm:$0xff]
        %v775 = vld [vmem:[%s757 + $0x88] sm:$0xff]
        %v776 = vld [vmem:[%s757 + $0x90] sm:$0xff]
        %v777 = vld [vmem:[%s757 + $0x98] sm:$0xff]
        %v778 = vld [vmem:[%s757 + $0xa0] sm:$0xff]
        %v779 = vld [vmem:[%s757 + $0xa8] sm:$0xff]
        %v780 = vld [vmem:[%s757 + $0xb0] sm:$0xff]
        %v781 = vld [vmem:[%s757 + $0xb8] sm:$0xff]
        %v782 = vld [vmem:[%s757 + $0xc0] sm:$0xff]
        %v783 = vld [vmem:[%s757 + $0xc8] sm:$0xff]
        %v784 = vld [vmem:[%s757 + $0xd0] sm:$0xff]
        %v785 = vld [vmem:[%s757 + $0xd8] sm:$0xff]
        %v786 = vld [vmem:[%s757 + $0xe0] sm:$0xff]
        %v787 = vld [vmem:[%s757 + $0xe8] sm:$0xff]
        %v788 = vld [vmem:[%s757 + $0xf0] sm:$0xff]
        %v789 = vld [vmem:[%s757 + $0xf8] sm:$0xff]
        %790 = vmatprep.subr.mxu0 0.0
        %791 = vmatpush1.msra.mxu0 %v758
        %792 = vmatprep.subr.mxu0 0.0
        %793 = vmatpush1.msra.mxu0 %v759
        %794 = vmatprep.subr.mxu0 0.0
        %795 = vmatpush1.msra.mxu0 %v760
        %796 = vmatprep.subr.mxu0 0.0
        %797 = vmatpush1.msra.mxu0 %v761
        %798 = vmatprep.subr.mxu0 0.0
        %799 = vmatpush1.msra.mxu0 %v762
        %800 = vmatprep.subr.mxu0 0.0
        %801 = vmatpush1.msra.mxu0 %v763
        %802 = vmatprep.subr.mxu0 0.0
        %803 = vmatpush1.msra.mxu0 %v764
        %804 = vmatprep.subr.mxu0 0.0
        %805 = vmatpush1.msra.mxu0 %v765
        %806 = vmatprep.subr.mxu0 0.0
        %807 = vmatpush1.msra.mxu0 %v766
        %808 = vmatprep.subr.mxu0 0.0
        %809 = vmatpush1.msra.mxu0 %v767
        %810 = vmatprep.subr.mxu0 0.0
        %811 = vmatpush1.msra.mxu0 %v768
        %812 = vmatprep.subr.mxu0 0.0
        %813 = vmatpush1.msra.mxu0 %v769
        %814 = vmatprep.subr.mxu0 0.0
        %815 = vmatpush1.msra.mxu0 %v770
        %816 = vmatprep.subr.mxu0 0.0
        %817 = vmatpush1.msra.mxu0 %v771
        %818 = vmatprep.subr.mxu0 0.0
        %819 = vmatpush1.msra.mxu0 %v772
        %820 = vmatprep.subr.mxu0 0.0
        %821 = vmatpush1.msra.mxu0 %v773
        %822 = vmatprep.subr.mxu0 0.0
        %823 = vmatpush1.msra.mxu0 %v774
        %824 = vmatprep.subr.mxu0 0.0
        %825 = vmatpush1.msra.mxu0 %v775
        %826 = vmatprep.subr.mxu0 0.0
        %827 = vmatpush1.msra.mxu0 %v776
        %828 = vmatprep.subr.mxu0 0.0
        %829 = vmatpush1.msra.mxu0 %v777
        %830 = vmatprep.subr.mxu0 0.0
        %831 = vmatpush1.msra.mxu0 %v778
        %832 = vmatprep.subr.mxu0 0.0
        %833 = vmatpush1.msra.mxu0 %v779
        %834 = vmatprep.subr.mxu0 0.0
        %835 = vmatpush1.msra.mxu0 %v780
        %836 = vmatprep.subr.mxu0 0.0
        %837 = vmatpush1.msra.mxu0 %v781
        %838 = vmatprep.subr.mxu0 0.0
        %839 = vmatpush1.msra.mxu0 %v782
        %840 = vmatprep.subr.mxu0 0.0
        %841 = vmatpush1.msra.mxu0 %v783
        %842 = vmatprep.subr.mxu0 0.0
        %843 = vmatpush1.msra.mxu0 %v784
        %844 = vmatprep.subr.mxu0 0.0
        %845 = vmatpush1.msra.mxu0 %v785
        %846 = vmatprep.subr.mxu0 0.0
        %847 = vmatpush1.msra.mxu0 %v786
        %848 = vmatprep.subr.mxu0 0.0
        %849 = vmatpush1.msra.mxu0 %v787
        %850 = vmatprep.subr.mxu0 0.0
        %851 = vmatpush1.msra.mxu0 %v788
        %852 = vmatprep.subr.mxu0 0.0
        %853 = vmatpush1.msra.mxu0 %v789
        %854 = vmatprep.mubr.f32.mxu0 %v756
        %855 = vmatmul.mubr.f32.gmra.mrb[0].mxu0 %v755
        %v856 = vpop.f32.mrb[0].mxu0
        %v857 = vadd.f32 0.0, %v856
        %v858 = vpop.f32.mrb[0].mxu0
        %859 = vdwg.mxu0
        %860 = vmatprep.subr.mxu0 0.0
        %861 = vmatpush1.msra.mxu0 %v717
        %862 = vmatprep.subr.mxu0 0.0
        %863 = vmatpush1.msra.mxu0 %v718
        %864 = vmatprep.subr.mxu0 0.0
        %865 = vmatpush1.msra.mxu0 %v719
        %866 = vmatprep.subr.mxu0 0.0
        %867 = vmatpush1.msra.mxu0 %v720
        %868 = vmatprep.subr.mxu0 0.0
        %869 = vmatpush1.msra.mxu0 %v721
        %870 = vmatprep.subr.mxu0 0.0
        %871 = vmatpush1.msra.mxu0 %v722
        %872 = vmatprep.subr.mxu0 0.0
        %873 = vmatpush1.msra.mxu0 %v723
        %874 = vmatprep.subr.mxu0 0.0
        %875 = vmatpush1.msra.mxu0 %v724
        %876 = vmatprep.subr.mxu0 0.0
        %877 = vmatpush1.msra.mxu0 %v725
        %878 = vmatprep.subr.mxu0 0.0
        %879 = vmatpush1.msra.mxu0 %v726
        %880 = vmatprep.subr.mxu0 0.0
        %881 = vmatpush1.msra.mxu0 %v727
        %882 = vmatprep.subr.mxu0 0.0
        %883 = vmatpush1.msra.mxu0 %v728
        %884 = vmatprep.subr.mxu0 0.0
        %885 = vmatpush1.msra.mxu0 %v729
        %886 = vmatprep.subr.mxu0 0.0
        %887 = vmatpush1.msra.mxu0 %v730
        %888 = vmatprep.subr.mxu0 0.0
        %889 = vmatpush1.msra.mxu0 %v731
        %890 = vmatprep.subr.mxu0 0.0
        %891 = vmatpush1.msra.mxu0 %v732
        %892 = vmatprep.subr.mxu0 0.0
        %893 = vmatpush1.msra.mxu0 %v733
        %894 = vmatprep.subr.mxu0 0.0
        %895 = vmatpush1.msra.mxu0 %v734
        %896 = vmatprep.subr.mxu0 0.0
        %897 = vmatpush1.msra.mxu0 %v735
        %898 = vmatprep.subr.mxu0 0.0
        %899 = vmatpush1.msra.mxu0 %v736
        %900 = vmatprep.subr.mxu0 0.0
        %901 = vmatpush1.msra.mxu0 %v737
        %902 = vmatprep.subr.mxu0 0.0
        %903 = vmatpush1.msra.mxu0 %v738
        %904 = vmatprep.subr.mxu0 0.0
        %905 = vmatpush1.msra.mxu0 %v739
        %906 = vmatprep.subr.mxu0 0.0
        %907 = vmatpush1.msra.mxu0 %v740
        %908 = vmatprep.subr.mxu0 0.0
        %909 = vmatpush1.msra.mxu0 %v741
        %910 = vmatprep.subr.mxu0 0.0
        %911 = vmatpush1.msra.mxu0 %v742
        %912 = vmatprep.subr.mxu0 0.0
        %913 = vmatpush1.msra.mxu0 %v743
        %914 = vmatprep.subr.mxu0 0.0
        %915 = vmatpush1.msra.mxu0 %v744
        %916 = vmatprep.subr.mxu0 0.0
        %917 = vmatpush1.msra.mxu0 %v745
        %918 = vmatprep.subr.mxu0 0.0
        %919 = vmatpush1.msra.mxu0 %v746
        %920 = vmatprep.subr.mxu0 0.0
        %921 = vmatpush1.msra.mxu0 %v747
        %922 = vmatprep.subr.mxu0 0.0
        %923 = vmatpush1.msra.mxu0 %v748
        %924 = vmatprep.mubr.f32.mxu0 %v716
        %925 = vmatmul.mubr.f32.gmra.mrb[0].mxu0 %v715
        %v926 = vpop.f32.mrb[0].mxu0
        %v927 = vadd.f32 %v857, %v926
        %v928 = vpop.f32.mrb[0].mxu0
        %929 = vdwg.mxu0
        %v930 = vrot.slane %v633, 2
        %v931 = vrot.slane %v634, 2
        %v934 = vrot.slane %v706, 1
        %v935 = vrot.slane %v707, 1
        %v938 = vsel %vm714, %v930, %v934
        %v939 = vsel %vm714, %v931, %v935
        %s940 = scalar_lea.vmem %s6, 512
        %v941 = vld [vmem:[%s940] sm:$0xff]
        %v942 = vld [vmem:[%s940 + $0x8] sm:$0xff]
        %v943 = vld [vmem:[%s940 + $0x10] sm:$0xff]
        %v944 = vld [vmem:[%s940 + $0x18] sm:$0xff]
        %v945 = vld [vmem:[%s940 + $0x20] sm:$0xff]
        %v946 = vld [vmem:[%s940 + $0x28] sm:$0xff]
        %v947 = vld [vmem:[%s940 + $0x30] sm:$0xff]
        %v948 = vld [vmem:[%s940 + $0x38] sm:$0xff]
        %v949 = vld [vmem:[%s940 + $0x40] sm:$0xff]
        %v950 = vld [vmem:[%s940 + $0x48] sm:$0xff]
        %v951 = vld [vmem:[%s940 + $0x50] sm:$0xff]
        %v952 = vld [vmem:[%s940 + $0x58] sm:$0xff]
        %v953 = vld [vmem:[%s940 + $0x60] sm:$0xff]
        %v954 = vld [vmem:[%s940 + $0x68] sm:$0xff]
        %v955 = vld [vmem:[%s940 + $0x70] sm:$0xff]
        %v956 = vld [vmem:[%s940 + $0x78] sm:$0xff]
        %v957 = vld [vmem:[%s940 + $0x80] sm:$0xff]
        %v958 = vld [vmem:[%s940 + $0x88] sm:$0xff]
        %v959 = vld [vmem:[%s940 + $0x90] sm:$0xff]
        %v960 = vld [vmem:[%s940 + $0x98] sm:$0xff]
        %v961 = vld [vmem:[%s940 + $0xa0] sm:$0xff]
        %v962 = vld [vmem:[%s940 + $0xa8] sm:$0xff]
        %v963 = vld [vmem:[%s940 + $0xb0] sm:$0xff]
        %v964 = vld [vmem:[%s940 + $0xb8] sm:$0xff]
        %v965 = vld [vmem:[%s940 + $0xc0] sm:$0xff]
        %v966 = vld [vmem:[%s940 + $0xc8] sm:$0xff]
        %v967 = vld [vmem:[%s940 + $0xd0] sm:$0xff]
        %v968 = vld [vmem:[%s940 + $0xd8] sm:$0xff]
        %v969 = vld [vmem:[%s940 + $0xe0] sm:$0xff]
        %v970 = vld [vmem:[%s940 + $0xe8] sm:$0xff]
        %v971 = vld [vmem:[%s940 + $0xf0] sm:$0xff]
        %v972 = vld [vmem:[%s940 + $0xf8] sm:$0xff]
        %973 = vmatprep.subr.mxu0 0.0
        %974 = vmatpush1.msra.mxu0 %v941
        %975 = vmatprep.subr.mxu0 0.0
        %976 = vmatpush1.msra.mxu0 %v942
        %977 = vmatprep.subr.mxu0 0.0
        %978 = vmatpush1.msra.mxu0 %v943
        %979 = vmatprep.subr.mxu0 0.0
        %980 = vmatpush1.msra.mxu0 %v944
        %981 = vmatprep.subr.mxu0 0.0
        %982 = vmatpush1.msra.mxu0 %v945
        %983 = vmatprep.subr.mxu0 0.0
        %984 = vmatpush1.msra.mxu0 %v946
        %985 = vmatprep.subr.mxu0 0.0
        %986 = vmatpush1.msra.mxu0 %v947
        %987 = vmatprep.subr.mxu0 0.0
        %988 = vmatpush1.msra.mxu0 %v948
        %989 = vmatprep.subr.mxu0 0.0
        %990 = vmatpush1.msra.mxu0 %v949
        %991 = vmatprep.subr.mxu0 0.0
        %992 = vmatpush1.msra.mxu0 %v950
        %993 = vmatprep.subr.mxu0 0.0
        %994 = vmatpush1.msra.mxu0 %v951
        %995 = vmatprep.subr.mxu0 0.0
        %996 = vmatpush1.msra.mxu0 %v952
        %997 = vmatprep.subr.mxu0 0.0
        %998 = vmatpush1.msra.mxu0 %v953
        %999 = vmatprep.subr.mxu0 0.0
        %1000 = vmatpush1.msra.mxu0 %v954
        %1001 = vmatprep.subr.mxu0 0.0
        %1002 = vmatpush1.msra.mxu0 %v955
        %1003 = vmatprep.subr.mxu0 0.0
        %1004 = vmatpush1.msra.mxu0 %v956
        %1005 = vmatprep.subr.mxu0 0.0
        %1006 = vmatpush1.msra.mxu0 %v957
        %1007 = vmatprep.subr.mxu0 0.0
        %1008 = vmatpush1.msra.mxu0 %v958
        %1009 = vmatprep.subr.mxu0 0.0
        %1010 = vmatpush1.msra.mxu0 %v959
        %1011 = vmatprep.subr.mxu0 0.0
        %1012 = vmatpush1.msra.mxu0 %v960
        %1013 = vmatprep.subr.mxu0 0.0
        %1014 = vmatpush1.msra.mxu0 %v961
        %1015 = vmatprep.subr.mxu0 0.0
        %1016 = vmatpush1.msra.mxu0 %v962
        %1017 = vmatprep.subr.mxu0 0.0
        %1018 = vmatpush1.msra.mxu0 %v963
        %1019 = vmatprep.subr.mxu0 0.0
        %1020 = vmatpush1.msra.mxu0 %v964
        %1021 = vmatprep.subr.mxu0 0.0
        %1022 = vmatpush1.msra.mxu0 %v965
        %1023 = vmatprep.subr.mxu0 0.0
        %1024 = vmatpush1.msra.mxu0 %v966
        %1025 = vmatprep.subr.mxu0 0.0
        %1026 = vmatpush1.msra.mxu0 %v967
        %1027 = vmatprep.subr.mxu0 0.0
        %1028 = vmatpush1.msra.mxu0 %v968
        %1029 = vmatprep.subr.mxu0 0.0
        %1030 = vmatpush1.msra.mxu0 %v969
        %1031 = vmatprep.subr.mxu0 0.0
        %1032 = vmatpush1.msra.mxu0 %v970
        %1033 = vmatprep.subr.mxu0 0.0
        %1034 = vmatpush1.msra.mxu0 %v971
        %1035 = vmatprep.subr.mxu0 0.0
        %1036 = vmatpush1.msra.mxu0 %v972
        %1037 = vmatprep.mubr.f32.mxu0 %v939
        %1038 = vmatmul.mubr.f32.gmra.mrb[0].mxu0 %v938
        %v1039 = vpop.f32.mrb[0].mxu0
        %v1040 = vadd.f32 0.0, %v1039
        %v1041 = vpop.f32.mrb[0].mxu0
        %1042 = vdwg.mxu0
        %v1043 = vadd.f32 %v927, %v1040
        %v1044 = vrot.slane %v633, 3
        %v1045 = vrot.slane %v634, 3
        %v1048 = vrot.slane %v706, 2
        %v1049 = vrot.slane %v707, 2
        %v1052 = vsel %vm714, %v1044, %v1048
        %v1053 = vsel %vm714, %v1045, %v1049
        %s1054 = scalar_lea.vmem %s6, 768
        %v1055 = vld [vmem:[%s1054] sm:$0xff]
        %v1056 = vld [vmem:[%s1054 + $0x8] sm:$0xff]
        %v1057 = vld [vmem:[%s1054 + $0x10] sm:$0xff]
        %v1058 = vld [vmem:[%s1054 + $0x18] sm:$0xff]
        %v1059 = vld [vmem:[%s1054 + $0x20] sm:$0xff]
        %v1060 = vld [vmem:[%s1054 + $0x28] sm:$0xff]
        %v1061 = vld [vmem:[%s1054 + $0x30] sm:$0xff]
        %v1062 = vld [vmem:[%s1054 + $0x38] sm:$0xff]
        %v1063 = vld [vmem:[%s1054 + $0x40] sm:$0xff]
        %v1064 = vld [vmem:[%s1054 + $0x48] sm:$0xff]
        %v1065 = vld [vmem:[%s1054 + $0x50] sm:$0xff]
        %v1066 = vld [vmem:[%s1054 + $0x58] sm:$0xff]
        %v1067 = vld [vmem:[%s1054 + $0x60] sm:$0xff]
        %v1068 = vld [vmem:[%s1054 + $0x68] sm:$0xff]
        %v1069 = vld [vmem:[%s1054 + $0x70] sm:$0xff]
        %v1070 = vld [vmem:[%s1054 + $0x78] sm:$0xff]
        %v1071 = vld [vmem:[%s1054 + $0x80] sm:$0xff]
        %v1072 = vld [vmem:[%s1054 + $0x88] sm:$0xff]
        %v1073 = vld [vmem:[%s1054 + $0x90] sm:$0xff]
        %v1074 = vld [vmem:[%s1054 + $0x98] sm:$0xff]
        %v1075 = vld [vmem:[%s1054 + $0xa0] sm:$0xff]
        %v1076 = vld [vmem:[%s1054 + $0xa8] sm:$0xff]
        %v1077 = vld [vmem:[%s1054 + $0xb0] sm:$0xff]
        %v1078 = vld [vmem:[%s1054 + $0xb8] sm:$0xff]
        %v1079 = vld [vmem:[%s1054 + $0xc0] sm:$0xff]
        %v1080 = vld [vmem:[%s1054 + $0xc8] sm:$0xff]
        %v1081 = vld [vmem:[%s1054 + $0xd0] sm:$0xff]
        %v1082 = vld [vmem:[%s1054 + $0xd8] sm:$0xff]
        %v1083 = vld [vmem:[%s1054 + $0xe0] sm:$0xff]
        %v1084 = vld [vmem:[%s1054 + $0xe8] sm:$0xff]
        %v1085 = vld [vmem:[%s1054 + $0xf0] sm:$0xff]
        %v1086 = vld [vmem:[%s1054 + $0xf8] sm:$0xff]
        %1087 = vmatprep.subr.mxu0 0.0
        %1088 = vmatpush1.msra.mxu0 %v1055
        %1089 = vmatprep.subr.mxu0 0.0
        %1090 = vmatpush1.msra.mxu0 %v1056
        %1091 = vmatprep.subr.mxu0 0.0
        %1092 = vmatpush1.msra.mxu0 %v1057
        %1093 = vmatprep.subr.mxu0 0.0
        %1094 = vmatpush1.msra.mxu0 %v1058
        %1095 = vmatprep.subr.mxu0 0.0
        %1096 = vmatpush1.msra.mxu0 %v1059
        %1097 = vmatprep.subr.mxu0 0.0
        %1098 = vmatpush1.msra.mxu0 %v1060
        %1099 = vmatprep.subr.mxu0 0.0
        %1100 = vmatpush1.msra.mxu0 %v1061
        %1101 = vmatprep.subr.mxu0 0.0
        %1102 = vmatpush1.msra.mxu0 %v1062
        %1103 = vmatprep.subr.mxu0 0.0
        %1104 = vmatpush1.msra.mxu0 %v1063
        %1105 = vmatprep.subr.mxu0 0.0
        %1106 = vmatpush1.msra.mxu0 %v1064
        %1107 = vmatprep.subr.mxu0 0.0
        %1108 = vmatpush1.msra.mxu0 %v1065
        %1109 = vmatprep.subr.mxu0 0.0
        %1110 = vmatpush1.msra.mxu0 %v1066
        %1111 = vmatprep.subr.mxu0 0.0
        %1112 = vmatpush1.msra.mxu0 %v1067
        %1113 = vmatprep.subr.mxu0 0.0
        %1114 = vmatpush1.msra.mxu0 %v1068
        %1115 = vmatprep.subr.mxu0 0.0
        %1116 = vmatpush1.msra.mxu0 %v1069
        %1117 = vmatprep.subr.mxu0 0.0
        %1118 = vmatpush1.msra.mxu0 %v1070
        %1119 = vmatprep.subr.mxu0 0.0
        %1120 = vmatpush1.msra.mxu0 %v1071
        %1121 = vmatprep.subr.mxu0 0.0
        %1122 = vmatpush1.msra.mxu0 %v1072
        %1123 = vmatprep.subr.mxu0 0.0
        %1124 = vmatpush1.msra.mxu0 %v1073
        %1125 = vmatprep.subr.mxu0 0.0
        %1126 = vmatpush1.msra.mxu0 %v1074
        %1127 = vmatprep.subr.mxu0 0.0
        %1128 = vmatpush1.msra.mxu0 %v1075
        %1129 = vmatprep.subr.mxu0 0.0
        %1130 = vmatpush1.msra.mxu0 %v1076
        %1131 = vmatprep.subr.mxu0 0.0
        %1132 = vmatpush1.msra.mxu0 %v1077
        %1133 = vmatprep.subr.mxu0 0.0
        %1134 = vmatpush1.msra.mxu0 %v1078
        %1135 = vmatprep.subr.mxu0 0.0
        %1136 = vmatpush1.msra.mxu0 %v1079
        %1137 = vmatprep.subr.mxu0 0.0
        %1138 = vmatpush1.msra.mxu0 %v1080
        %1139 = vmatprep.subr.mxu0 0.0
        %1140 = vmatpush1.msra.mxu0 %v1081
        %1141 = vmatprep.subr.mxu0 0.0
        %1142 = vmatpush1.msra.mxu0 %v1082
        %1143 = vmatprep.subr.mxu0 0.0
        %1144 = vmatpush1.msra.mxu0 %v1083
        %1145 = vmatprep.subr.mxu0 0.0
        %1146 = vmatpush1.msra.mxu0 %v1084
        %1147 = vmatprep.subr.mxu0 0.0
        %1148 = vmatpush1.msra.mxu0 %v1085
        %1149 = vmatprep.subr.mxu0 0.0
        %1150 = vmatpush1.msra.mxu0 %v1086
        %1151 = vmatprep.mubr.f32.mxu0 %v1053
        %1152 = vmatmul.mubr.f32.gmra.mrb[0].mxu0 %v1052
        %v1153 = vpop.f32.mrb[0].mxu0
        %v1154 = vadd.f32 0.0, %v1153
        %v1155 = vpop.f32.mrb[0].mxu0
        %1156 = vdwg.mxu0
        %v1157 = vadd.f32 %v1043, %v1154
        %v1158 = vrot.slane %v633, 4
        %v1159 = vrot.slane %v634, 4
        %v1162 = vrot.slane %v706, 3
        %v1163 = vrot.slane %v707, 3
        %v1166 = vsel %vm714, %v1158, %v1162
        %v1167 = vsel %vm714, %v1159, %v1163
        %s1168 = scalar_lea.vmem %s6, 1024
        %v1169 = vld [vmem:[%s1168] sm:$0xff]
        %v1170 = vld [vmem:[%s1168 + $0x8] sm:$0xff]
        %v1171 = vld [vmem:[%s1168 + $0x10] sm:$0xff]
        %v1172 = vld [vmem:[%s1168 + $0x18] sm:$0xff]
        %v1173 = vld [vmem:[%s1168 + $0x20] sm:$0xff]
        %v1174 = vld [vmem:[%s1168 + $0x28] sm:$0xff]
        %v1175 = vld [vmem:[%s1168 + $0x30] sm:$0xff]
        %v1176 = vld [vmem:[%s1168 + $0x38] sm:$0xff]
        %v1177 = vld [vmem:[%s1168 + $0x40] sm:$0xff]
        %v1178 = vld [vmem:[%s1168 + $0x48] sm:$0xff]
        %v1179 = vld [vmem:[%s1168 + $0x50] sm:$0xff]
        %v1180 = vld [vmem:[%s1168 + $0x58] sm:$0xff]
        %v1181 = vld [vmem:[%s1168 + $0x60] sm:$0xff]
        %v1182 = vld [vmem:[%s1168 + $0x68] sm:$0xff]
        %v1183 = vld [vmem:[%s1168 + $0x70] sm:$0xff]
        %v1184 = vld [vmem:[%s1168 + $0x78] sm:$0xff]
        %v1185 = vld [vmem:[%s1168 + $0x80] sm:$0xff]
        %v1186 = vld [vmem:[%s1168 + $0x88] sm:$0xff]
        %v1187 = vld [vmem:[%s1168 + $0x90] sm:$0xff]
        %v1188 = vld [vmem:[%s1168 + $0x98] sm:$0xff]
        %v1189 = vld [vmem:[%s1168 + $0xa0] sm:$0xff]
        %v1190 = vld [vmem:[%s1168 + $0xa8] sm:$0xff]
        %v1191 = vld [vmem:[%s1168 + $0xb0] sm:$0xff]
        %v1192 = vld [vmem:[%s1168 + $0xb8] sm:$0xff]
        %v1193 = vld [vmem:[%s1168 + $0xc0] sm:$0xff]
        %v1194 = vld [vmem:[%s1168 + $0xc8] sm:$0xff]
        %v1195 = vld [vmem:[%s1168 + $0xd0] sm:$0xff]
        %v1196 = vld [vmem:[%s1168 + $0xd8] sm:$0xff]
        %v1197 = vld [vmem:[%s1168 + $0xe0] sm:$0xff]
        %v1198 = vld [vmem:[%s1168 + $0xe8] sm:$0xff]
        %v1199 = vld [vmem:[%s1168 + $0xf0] sm:$0xff]
        %v1200 = vld [vmem:[%s1168 + $0xf8] sm:$0xff]
        %1201 = vmatprep.subr.mxu0 0.0
        %1202 = vmatpush1.msra.mxu0 %v1169
        %1203 = vmatprep.subr.mxu0 0.0
        %1204 = vmatpush1.msra.mxu0 %v1170
        %1205 = vmatprep.subr.mxu0 0.0
        %1206 = vmatpush1.msra.mxu0 %v1171
        %1207 = vmatprep.subr.mxu0 0.0
        %1208 = vmatpush1.msra.mxu0 %v1172
        %1209 = vmatprep.subr.mxu0 0.0
        %1210 = vmatpush1.msra.mxu0 %v1173
        %1211 = vmatprep.subr.mxu0 0.0
        %1212 = vmatpush1.msra.mxu0 %v1174
        %1213 = vmatprep.subr.mxu0 0.0
        %1214 = vmatpush1.msra.mxu0 %v1175
        %1215 = vmatprep.subr.mxu0 0.0
        %1216 = vmatpush1.msra.mxu0 %v1176
        %1217 = vmatprep.subr.mxu0 0.0
        %1218 = vmatpush1.msra.mxu0 %v1177
        %1219 = vmatprep.subr.mxu0 0.0
        %1220 = vmatpush1.msra.mxu0 %v1178
        %1221 = vmatprep.subr.mxu0 0.0
        %1222 = vmatpush1.msra.mxu0 %v1179
        %1223 = vmatprep.subr.mxu0 0.0
        %1224 = vmatpush1.msra.mxu0 %v1180
        %1225 = vmatprep.subr.mxu0 0.0
        %1226 = vmatpush1.msra.mxu0 %v1181
        %1227 = vmatprep.subr.mxu0 0.0
        %1228 = vmatpush1.msra.mxu0 %v1182
        %1229 = vmatprep.subr.mxu0 0.0
        %1230 = vmatpush1.msra.mxu0 %v1183
        %1231 = vmatprep.subr.mxu0 0.0
        %1232 = vmatpush1.msra.mxu0 %v1184
        %1233 = vmatprep.subr.mxu0 0.0
        %1234 = vmatpush1.msra.mxu0 %v1185
        %1235 = vmatprep.subr.mxu0 0.0
        %1236 = vmatpush1.msra.mxu0 %v1186
        %1237 = vmatprep.subr.mxu0 0.0
        %1238 = vmatpush1.msra.mxu0 %v1187
        %1239 = vmatprep.subr.mxu0 0.0
        %1240 = vmatpush1.msra.mxu0 %v1188
        %1241 = vmatprep.subr.mxu0 0.0
        %1242 = vmatpush1.msra.mxu0 %v1189
        %1243 = vmatprep.subr.mxu0 0.0
        %1244 = vmatpush1.msra.mxu0 %v1190
        %1245 = vmatprep.subr.mxu0 0.0
        %1246 = vmatpush1.msra.mxu0 %v1191
        %1247 = vmatprep.subr.mxu0 0.0
        %1248 = vmatpush1.msra.mxu0 %v1192
        %1249 = vmatprep.subr.mxu0 0.0
        %1250 = vmatpush1.msra.mxu0 %v1193
        %1251 = vmatprep.subr.mxu0 0.0
        %1252 = vmatpush1.msra.mxu0 %v1194
        %1253 = vmatprep.subr.mxu0 0.0
        %1254 = vmatpush1.msra.mxu0 %v1195
        %1255 = vmatprep.subr.mxu0 0.0
        %1256 = vmatpush1.msra.mxu0 %v1196
        %1257 = vmatprep.subr.mxu0 0.0
        %1258 = vmatpush1.msra.mxu0 %v1197
        %1259 = vmatprep.subr.mxu0 0.0
        %1260 = vmatpush1.msra.mxu0 %v1198
        %1261 = vmatprep.subr.mxu0 0.0
        %1262 = vmatpush1.msra.mxu0 %v1199
        %1263 = vmatprep.subr.mxu0 0.0
        %1264 = vmatpush1.msra.mxu0 %v1200
        %1265 = vmatprep.mubr.f32.mxu0 %v1167
        %1266 = vmatmul.mubr.f32.gmra.mrb[0].mxu0 %v1166
        %v1267 = vpop.f32.mrb[0].mxu0
        %v1268 = vadd.f32 0.0, %v1267
        %v1269 = vpop.f32.mrb[0].mxu0
        %1270 = vdwg.mxu0
        %v1271 = vadd.f32 %v1157, %v1268
        %v1272 = vrot.slane %v633, 5
        %v1273 = vrot.slane %v634, 5
        %v1276 = vrot.slane %v706, 4
        %v1277 = vrot.slane %v707, 4
        %v1280 = vsel %vm714, %v1272, %v1276
        %v1281 = vsel %vm714, %v1273, %v1277
        %s1282 = scalar_lea.vmem %s6, 1280
        %v1283 = vld [vmem:[%s1282] sm:$0xff]
        %v1284 = vld [vmem:[%s1282 + $0x8] sm:$0xff]
        %v1285 = vld [vmem:[%s1282 + $0x10] sm:$0xff]
        %v1286 = vld [vmem:[%s1282 + $0x18] sm:$0xff]
        %v1287 = vld [vmem:[%s1282 + $0x20] sm:$0xff]
        %v1288 = vld [vmem:[%s1282 + $0x28] sm:$0xff]
        %v1289 = vld [vmem:[%s1282 + $0x30] sm:$0xff]
        %v1290 = vld [vmem:[%s1282 + $0x38] sm:$0xff]
        %v1291 = vld [vmem:[%s1282 + $0x40] sm:$0xff]
        %v1292 = vld [vmem:[%s1282 + $0x48] sm:$0xff]
        %v1293 = vld [vmem:[%s1282 + $0x50] sm:$0xff]
        %v1294 = vld [vmem:[%s1282 + $0x58] sm:$0xff]
        %v1295 = vld [vmem:[%s1282 + $0x60] sm:$0xff]
        %v1296 = vld [vmem:[%s1282 + $0x68] sm:$0xff]
        %v1297 = vld [vmem:[%s1282 + $0x70] sm:$0xff]
        %v1298 = vld [vmem:[%s1282 + $0x78] sm:$0xff]
        %v1299 = vld [vmem:[%s1282 + $0x80] sm:$0xff]
        %v1300 = vld [vmem:[%s1282 + $0x88] sm:$0xff]
        %v1301 = vld [vmem:[%s1282 + $0x90] sm:$0xff]
        %v1302 = vld [vmem:[%s1282 + $0x98] sm:$0xff]
        %v1303 = vld [vmem:[%s1282 + $0xa0] sm:$0xff]
        %v1304 = vld [vmem:[%s1282 + $0xa8] sm:$0xff]
        %v1305 = vld [vmem:[%s1282 + $0xb0] sm:$0xff]
        %v1306 = vld [vmem:[%s1282 + $0xb8] sm:$0xff]
        %v1307 = vld [vmem:[%s1282 + $0xc0] sm:$0xff]
        %v1308 = vld [vmem:[%s1282 + $0xc8] sm:$0xff]
        %v1309 = vld [vmem:[%s1282 + $0xd0] sm:$0xff]
        %v1310 = vld [vmem:[%s1282 + $0xd8] sm:$0xff]
        %v1311 = vld [vmem:[%s1282 + $0xe0] sm:$0xff]
        %v1312 = vld [vmem:[%s1282 + $0xe8] sm:$0xff]
        %v1313 = vld [vmem:[%s1282 + $0xf0] sm:$0xff]
        %v1314 = vld [vmem:[%s1282 + $0xf8] sm:$0xff]
        %1315 = vmatprep.subr.mxu0 0.0
        %1316 = vmatpush1.msra.mxu0 %v1283
        %1317 = vmatprep.subr.mxu0 0.0
        %1318 = vmatpush1.msra.mxu0 %v1284
        %1319 = vmatprep.subr.mxu0 0.0
        %1320 = vmatpush1.msra.mxu0 %v1285
        %1321 = vmatprep.subr.mxu0 0.0
        %1322 = vmatpush1.msra.mxu0 %v1286
        %1323 = vmatprep.subr.mxu0 0.0
        %1324 = vmatpush1.msra.mxu0 %v1287
        %1325 = vmatprep.subr.mxu0 0.0
        %1326 = vmatpush1.msra.mxu0 %v1288
        %1327 = vmatprep.subr.mxu0 0.0
        %1328 = vmatpush1.msra.mxu0 %v1289
        %1329 = vmatprep.subr.mxu0 0.0
        %1330 = vmatpush1.msra.mxu0 %v1290
        %1331 = vmatprep.subr.mxu0 0.0
        %1332 = vmatpush1.msra.mxu0 %v1291
        %1333 = vmatprep.subr.mxu0 0.0
        %1334 = vmatpush1.msra.mxu0 %v1292
        %1335 = vmatprep.subr.mxu0 0.0
        %1336 = vmatpush1.msra.mxu0 %v1293
        %1337 = vmatprep.subr.mxu0 0.0
        %1338 = vmatpush1.msra.mxu0 %v1294
        %1339 = vmatprep.subr.mxu0 0.0
        %1340 = vmatpush1.msra.mxu0 %v1295
        %1341 = vmatprep.subr.mxu0 0.0
        %1342 = vmatpush1.msra.mxu0 %v1296
        %1343 = vmatprep.subr.mxu0 0.0
        %1344 = vmatpush1.msra.mxu0 %v1297
        %1345 = vmatprep.subr.mxu0 0.0
        %1346 = vmatpush1.msra.mxu0 %v1298
        %1347 = vmatprep.subr.mxu0 0.0
        %1348 = vmatpush1.msra.mxu0 %v1299
        %1349 = vmatprep.subr.mxu0 0.0
        %1350 = vmatpush1.msra.mxu0 %v1300
        %1351 = vmatprep.subr.mxu0 0.0
        %1352 = vmatpush1.msra.mxu0 %v1301
        %1353 = vmatprep.subr.mxu0 0.0
        %1354 = vmatpush1.msra.mxu0 %v1302
        %1355 = vmatprep.subr.mxu0 0.0
        %1356 = vmatpush1.msra.mxu0 %v1303
        %1357 = vmatprep.subr.mxu0 0.0
        %1358 = vmatpush1.msra.mxu0 %v1304
        %1359 = vmatprep.subr.mxu0 0.0
        %1360 = vmatpush1.msra.mxu0 %v1305
        %1361 = vmatprep.subr.mxu0 0.0
        %1362 = vmatpush1.msra.mxu0 %v1306
        %1363 = vmatprep.subr.mxu0 0.0
        %1364 = vmatpush1.msra.mxu0 %v1307
        %1365 = vmatprep.subr.mxu0 0.0
        %1366 = vmatpush1.msra.mxu0 %v1308
        %1367 = vmatprep.subr.mxu0 0.0
        %1368 = vmatpush1.msra.mxu0 %v1309
        %1369 = vmatprep.subr.mxu0 0.0
        %1370 = vmatpush1.msra.mxu0 %v1310
        %1371 = vmatprep.subr.mxu0 0.0
        %1372 = vmatpush1.msra.mxu0 %v1311
        %1373 = vmatprep.subr.mxu0 0.0
        %1374 = vmatpush1.msra.mxu0 %v1312
        %1375 = vmatprep.subr.mxu0 0.0
        %1376 = vmatpush1.msra.mxu0 %v1313
        %1377 = vmatprep.subr.mxu0 0.0
        %1378 = vmatpush1.msra.mxu0 %v1314
        %1379 = vmatprep.mubr.f32.mxu0 %v1281
        %1380 = vmatmul.mubr.f32.gmra.mrb[0].mxu0 %v1280
        %v1381 = vpop.f32.mrb[0].mxu0
        %v1382 = vadd.f32 0.0, %v1381
        %v1383 = vpop.f32.mrb[0].mxu0
        %1384 = vdwg.mxu0
        %v1385 = vadd.f32 %v1271, %v1382
        %v1386 = vrot.slane %v633, 6
        %v1387 = vrot.slane %v634, 6
        %v1390 = vrot.slane %v706, 5
        %v1391 = vrot.slane %v707, 5
        %v1394 = vsel %vm714, %v1386, %v1390
        %v1395 = vsel %vm714, %v1387, %v1391
        %s1396 = scalar_lea.vmem %s6, 1536
        %v1397 = vld [vmem:[%s1396] sm:$0xff]
        %v1398 = vld [vmem:[%s1396 + $0x8] sm:$0xff]
        %v1399 = vld [vmem:[%s1396 + $0x10] sm:$0xff]
        %v1400 = vld [vmem:[%s1396 + $0x18] sm:$0xff]
        %v1401 = vld [vmem:[%s1396 + $0x20] sm:$0xff]
        %v1402 = vld [vmem:[%s1396 + $0x28] sm:$0xff]
        %v1403 = vld [vmem:[%s1396 + $0x30] sm:$0xff]
        %v1404 = vld [vmem:[%s1396 + $0x38] sm:$0xff]
        %v1405 = vld [vmem:[%s1396 + $0x40] sm:$0xff]
        %v1406 = vld [vmem:[%s1396 + $0x48] sm:$0xff]
        %v1407 = vld [vmem:[%s1396 + $0x50] sm:$0xff]
        %v1408 = vld [vmem:[%s1396 + $0x58] sm:$0xff]
        %v1409 = vld [vmem:[%s1396 + $0x60] sm:$0xff]
        %v1410 = vld [vmem:[%s1396 + $0x68] sm:$0xff]
        %v1411 = vld [vmem:[%s1396 + $0x70] sm:$0xff]
        %v1412 = vld [vmem:[%s1396 + $0x78] sm:$0xff]
        %v1413 = vld [vmem:[%s1396 + $0x80] sm:$0xff]
        %v1414 = vld [vmem:[%s1396 + $0x88] sm:$0xff]
        %v1415 = vld [vmem:[%s1396 + $0x90] sm:$0xff]
        %v1416 = vld [vmem:[%s1396 + $0x98] sm:$0xff]
        %v1417 = vld [vmem:[%s1396 + $0xa0] sm:$0xff]
        %v1418 = vld [vmem:[%s1396 + $0xa8] sm:$0xff]
        %v1419 = vld [vmem:[%s1396 + $0xb0] sm:$0xff]
        %v1420 = vld [vmem:[%s1396 + $0xb8] sm:$0xff]
        %v1421 = vld [vmem:[%s1396 + $0xc0] sm:$0xff]
        %v1422 = vld [vmem:[%s1396 + $0xc8] sm:$0xff]
        %v1423 = vld [vmem:[%s1396 + $0xd0] sm:$0xff]
        %v1424 = vld [vmem:[%s1396 + $0xd8] sm:$0xff]
        %v1425 = vld [vmem:[%s1396 + $0xe0] sm:$0xff]
        %v1426 = vld [vmem:[%s1396 + $0xe8] sm:$0xff]
        %v1427 = vld [vmem:[%s1396 + $0xf0] sm:$0xff]
        %v1428 = vld [vmem:[%s1396 + $0xf8] sm:$0xff]
        %1429 = vmatprep.subr.mxu0 0.0
        %1430 = vmatpush1.msra.mxu0 %v1397
        %1431 = vmatprep.subr.mxu0 0.0
        %1432 = vmatpush1.msra.mxu0 %v1398
        %1433 = vmatprep.subr.mxu0 0.0
        %1434 = vmatpush1.msra.mxu0 %v1399
        %1435 = vmatprep.subr.mxu0 0.0
        %1436 = vmatpush1.msra.mxu0 %v1400
        %1437 = vmatprep.subr.mxu0 0.0
        %1438 = vmatpush1.msra.mxu0 %v1401
        %1439 = vmatprep.subr.mxu0 0.0
        %1440 = vmatpush1.msra.mxu0 %v1402
        %1441 = vmatprep.subr.mxu0 0.0
        %1442 = vmatpush1.msra.mxu0 %v1403
        %1443 = vmatprep.subr.mxu0 0.0
        %1444 = vmatpush1.msra.mxu0 %v1404
        %1445 = vmatprep.subr.mxu0 0.0
        %1446 = vmatpush1.msra.mxu0 %v1405
        %1447 = vmatprep.subr.mxu0 0.0
        %1448 = vmatpush1.msra.mxu0 %v1406
        %1449 = vmatprep.subr.mxu0 0.0
        %1450 = vmatpush1.msra.mxu0 %v1407
        %1451 = vmatprep.subr.mxu0 0.0
        %1452 = vmatpush1.msra.mxu0 %v1408
        %1453 = vmatprep.subr.mxu0 0.0
        %1454 = vmatpush1.msra.mxu0 %v1409
        %1455 = vmatprep.subr.mxu0 0.0
        %1456 = vmatpush1.msra.mxu0 %v1410
        %1457 = vmatprep.subr.mxu0 0.0
        %1458 = vmatpush1.msra.mxu0 %v1411
        %1459 = vmatprep.subr.mxu0 0.0
        %1460 = vmatpush1.msra.mxu0 %v1412
        %1461 = vmatprep.subr.mxu0 0.0
        %1462 = vmatpush1.msra.mxu0 %v1413
        %1463 = vmatprep.subr.mxu0 0.0
        %1464 = vmatpush1.msra.mxu0 %v1414
        %1465 = vmatprep.subr.mxu0 0.0
        %1466 = vmatpush1.msra.mxu0 %v1415
        %1467 = vmatprep.subr.mxu0 0.0
        %1468 = vmatpush1.msra.mxu0 %v1416
        %1469 = vmatprep.subr.mxu0 0.0
        %1470 = vmatpush1.msra.mxu0 %v1417
        %1471 = vmatprep.subr.mxu0 0.0
        %1472 = vmatpush1.msra.mxu0 %v1418
        %1473 = vmatprep.subr.mxu0 0.0
        %1474 = vmatpush1.msra.mxu0 %v1419
        %1475 = vmatprep.subr.mxu0 0.0
        %1476 = vmatpush1.msra.mxu0 %v1420
        %1477 = vmatprep.subr.mxu0 0.0
        %1478 = vmatpush1.msra.mxu0 %v1421
        %1479 = vmatprep.subr.mxu0 0.0
        %1480 = vmatpush1.msra.mxu0 %v1422
        %1481 = vmatprep.subr.mxu0 0.0
        %1482 = vmatpush1.msra.mxu0 %v1423
        %1483 = vmatprep.subr.mxu0 0.0
        %1484 = vmatpush1.msra.mxu0 %v1424
        %1485 = vmatprep.subr.mxu0 0.0
        %1486 = vmatpush1.msra.mxu0 %v1425
        %1487 = vmatprep.subr.mxu0 0.0
        %1488 = vmatpush1.msra.mxu0 %v1426
        %1489 = vmatprep.subr.mxu0 0.0
        %1490 = vmatpush1.msra.mxu0 %v1427
        %1491 = vmatprep.subr.mxu0 0.0
        %1492 = vmatpush1.msra.mxu0 %v1428
        %1493 = vmatprep.mubr.f32.mxu0 %v1395
        %1494 = vmatmul.mubr.f32.gmra.mrb[0].mxu0 %v1394
        %v1495 = vpop.f32.mrb[0].mxu0
        %v1496 = vadd.f32 0.0, %v1495
        %v1497 = vpop.f32.mrb[0].mxu0
        %1498 = vdwg.mxu0
        %v1499 = vadd.f32 %v1385, %v1496
        %v1500 = vrot.slane %v633, 7
        %v1501 = vrot.slane %v634, 7
        %v1504 = vrot.slane %v706, 6
        %v1505 = vrot.slane %v707, 6
        %v1508 = vsel %vm714, %v1500, %v1504
        %v1509 = vsel %vm714, %v1501, %v1505
        %s1510 = scalar_lea.vmem %s6, 1792
        %v1511 = vld [vmem:[%s1510] sm:$0xff]
        %v1512 = vld [vmem:[%s1510 + $0x8] sm:$0xff]
        %v1513 = vld [vmem:[%s1510 + $0x10] sm:$0xff]
        %v1514 = vld [vmem:[%s1510 + $0x18] sm:$0xff]
        %v1515 = vld [vmem:[%s1510 + $0x20] sm:$0xff]
        %v1516 = vld [vmem:[%s1510 + $0x28] sm:$0xff]
        %v1517 = vld [vmem:[%s1510 + $0x30] sm:$0xff]
        %v1518 = vld [vmem:[%s1510 + $0x38] sm:$0xff]
        %v1519 = vld [vmem:[%s1510 + $0x40] sm:$0xff]
        %v1520 = vld [vmem:[%s1510 + $0x48] sm:$0xff]
        %v1521 = vld [vmem:[%s1510 + $0x50] sm:$0xff]
        %v1522 = vld [vmem:[%s1510 + $0x58] sm:$0xff]
        %v1523 = vld [vmem:[%s1510 + $0x60] sm:$0xff]
        %v1524 = vld [vmem:[%s1510 + $0x68] sm:$0xff]
        %v1525 = vld [vmem:[%s1510 + $0x70] sm:$0xff]
        %v1526 = vld [vmem:[%s1510 + $0x78] sm:$0xff]
        %v1527 = vld [vmem:[%s1510 + $0x80] sm:$0xff]
        %v1528 = vld [vmem:[%s1510 + $0x88] sm:$0xff]
        %v1529 = vld [vmem:[%s1510 + $0x90] sm:$0xff]
        %v1530 = vld [vmem:[%s1510 + $0x98] sm:$0xff]
        %v1531 = vld [vmem:[%s1510 + $0xa0] sm:$0xff]
        %v1532 = vld [vmem:[%s1510 + $0xa8] sm:$0xff]
        %v1533 = vld [vmem:[%s1510 + $0xb0] sm:$0xff]
        %v1534 = vld [vmem:[%s1510 + $0xb8] sm:$0xff]
        %v1535 = vld [vmem:[%s1510 + $0xc0] sm:$0xff]
        %v1536 = vld [vmem:[%s1510 + $0xc8] sm:$0xff]
        %v1537 = vld [vmem:[%s1510 + $0xd0] sm:$0xff]
        %v1538 = vld [vmem:[%s1510 + $0xd8] sm:$0xff]
        %v1539 = vld [vmem:[%s1510 + $0xe0] sm:$0xff]
        %v1540 = vld [vmem:[%s1510 + $0xe8] sm:$0xff]
        %v1541 = vld [vmem:[%s1510 + $0xf0] sm:$0xff]
        %v1542 = vld [vmem:[%s1510 + $0xf8] sm:$0xff]
        %1543 = vmatprep.subr.mxu0 0.0
        %1544 = vmatpush1.msra.mxu0 %v1511
        %1545 = vmatprep.subr.mxu0 0.0
        %1546 = vmatpush1.msra.mxu0 %v1512
        %1547 = vmatprep.subr.mxu0 0.0
        %1548 = vmatpush1.msra.mxu0 %v1513
        %1549 = vmatprep.subr.mxu0 0.0
        %1550 = vmatpush1.msra.mxu0 %v1514
        %1551 = vmatprep.subr.mxu0 0.0
        %1552 = vmatpush1.msra.mxu0 %v1515
        %1553 = vmatprep.subr.mxu0 0.0
        %1554 = vmatpush1.msra.mxu0 %v1516
        %1555 = vmatprep.subr.mxu0 0.0
        %1556 = vmatpush1.msra.mxu0 %v1517
        %1557 = vmatprep.subr.mxu0 0.0
        %1558 = vmatpush1.msra.mxu0 %v1518
        %1559 = vmatprep.subr.mxu0 0.0
        %1560 = vmatpush1.msra.mxu0 %v1519
        %1561 = vmatprep.subr.mxu0 0.0
        %1562 = vmatpush1.msra.mxu0 %v1520
        %1563 = vmatprep.subr.mxu0 0.0
        %1564 = vmatpush1.msra.mxu0 %v1521
        %1565 = vmatprep.subr.mxu0 0.0
        %1566 = vmatpush1.msra.mxu0 %v1522
        %1567 = vmatprep.subr.mxu0 0.0
        %1568 = vmatpush1.msra.mxu0 %v1523
        %1569 = vmatprep.subr.mxu0 0.0
        %1570 = vmatpush1.msra.mxu0 %v1524
        %1571 = vmatprep.subr.mxu0 0.0
        %1572 = vmatpush1.msra.mxu0 %v1525
        %1573 = vmatprep.subr.mxu0 0.0
        %1574 = vmatpush1.msra.mxu0 %v1526
        %1575 = vmatprep.subr.mxu0 0.0
        %1576 = vmatpush1.msra.mxu0 %v1527
        %1577 = vmatprep.subr.mxu0 0.0
        %1578 = vmatpush1.msra.mxu0 %v1528
        %1579 = vmatprep.subr.mxu0 0.0
        %1580 = vmatpush1.msra.mxu0 %v1529
        %1581 = vmatprep.subr.mxu0 0.0
        %1582 = vmatpush1.msra.mxu0 %v1530
        %1583 = vmatprep.subr.mxu0 0.0
        %1584 = vmatpush1.msra.mxu0 %v1531
        %1585 = vmatprep.subr.mxu0 0.0
        %1586 = vmatpush1.msra.mxu0 %v1532
        %1587 = vmatprep.subr.mxu0 0.0
        %1588 = vmatpush1.msra.mxu0 %v1533
        %1589 = vmatprep.subr.mxu0 0.0
        %1590 = vmatpush1.msra.mxu0 %v1534
        %1591 = vmatprep.subr.mxu0 0.0
        %1592 = vmatpush1.msra.mxu0 %v1535
        %1593 = vmatprep.subr.mxu0 0.0
        %1594 = vmatpush1.msra.mxu0 %v1536
        %1595 = vmatprep.subr.mxu0 0.0
        %1596 = vmatpush1.msra.mxu0 %v1537
        %1597 = vmatprep.subr.mxu0 0.0
        %1598 = vmatpush1.msra.mxu0 %v1538
        %1599 = vmatprep.subr.mxu0 0.0
        %1600 = vmatpush1.msra.mxu0 %v1539
        %1601 = vmatprep.subr.mxu0 0.0
        %1602 = vmatpush1.msra.mxu0 %v1540
        %1603 = vmatprep.subr.mxu0 0.0
        %1604 = vmatpush1.msra.mxu0 %v1541
        %1605 = vmatprep.subr.mxu0 0.0
        %1606 = vmatpush1.msra.mxu0 %v1542
        %1607 = vmatprep.mubr.f32.mxu0 %v1509
        %1608 = vmatmul.mubr.f32.gmra.mrb[0].mxu0 %v1508
        %v1609 = vpop.f32.mrb[0].mxu0
        %v1610 = vadd.f32 0.0, %v1609
        %v1611 = vpop.f32.mrb[0].mxu0
        %1612 = vdwg.mxu0
        %v1613 = vadd.f32 %v1499, %v1610
        %v1614 = vld [vmem:[%s7] sm:$0x1]
        %v1616 = vlaneseq
        %v1617 = vshrl.u32 %v1616, 7
        %v1618 = vsub.s32 0, %v1617
        %v1619 = vrot.slane %v1614, %v1618
        %v1621 = vadd.f32 %v1613, %v1619
        %1622 = vst [vmem:[%s301] sm:$0x3] %v1621
        %s1623 = sand.u32 %s203, 1
        %s1624 = scalar_lea.sflag [#allocation3], %s1623
        %s1625 = sand.u32 %s203, 1
        %s1626 = smul.addr %s1625, 2
        %s1627 = scalar_lea.vmem [#allocation2], %s1626
        // Predicated region
        $region53: #{model_with_normalize.1} parent=51 // pred_check
          %p1628 = pneg %p213
        $region54: #{model_with_normalize.1} parent=51 // pred_check_branch
          %1630 = sbr.rel (%p1628) target = $region56
        $region55: #{model_with_normalize.1} parent=51 // pred_region
          %s1632 = ssub.s32 32, 32
          %1633 = vsyncadd %s1624, %s1632
          %s1634 = smul.addr %s22, 32
          %s1635 = scalar_lea.hbm %s8, %s1634
          %s1637 = sshll.u32 %s1627, 4
          %s1638 = int_to_ptr.vmem [resolvable:$true] %s1637
          %1640 = dma.vmem_to_hbm [thread:$0]  %s1638, 32, %s1635, %s1624
        $region56: #{model_with_normalize.1} parent=51 // pred_fallthru
          _
      $region52: #{model_with_normalize.1} parent=5 // pred_fallthru
        _
      %p1641 = scmp.le.s32.totalorder 2, %s17
      // Predicated region
      $region57: #{model_with_normalize.1} parent=5 // pred_check
        %p1642 = pneg %p1641
      $region58: #{model_with_normalize.1} parent=5 // pred_check_branch
        %1644 = sbr.rel (%p1642) target = $region60
      $region59: #{model_with_normalize.1} parent=5 // pred_region
        %s1645 = ssub.s32 %s17, 2
        // Predicated region
        $region61: #{model_with_normalize.1} parent=59 // pred_check
          %p1646 = pneg %p219
        $region62: #{model_with_normalize.1} parent=59 // pred_check_branch
          %1648 = sbr.rel (%p1646) target = $region64
        $region63: #{model_with_normalize.1} parent=59 // pred_region
          %s1649 = sand.u32 %s204, 1
          %s1650 = scalar_lea.sflag [#allocation3], %s1649
          %s1651 = sand.u32 %s204, 1
          %s1652 = smul.addr %s1651, 2
          %s1653 = scalar_lea.vmem [#allocation2], %s1652
          %1654 = dma.done %s1650, 32
        $region64: #{model_with_normalize.1} parent=59 // pred_fallthru
          _
      $region60: #{model_with_normalize.1} parent=5 // pred_fallthru
        _
    $region6: #{model_with_normalize.1} parent=1 // loop_footer
      %s21 = sadd.s32 1, %s17
    $region7: #{model_with_normalize.1} parent=1 // loop_footer_branch
      %16 = sbr.rel target = $region3
    $region8: #{model_with_normalize.1} parent=1 // loop_exit
      _
    %1655 = vsyncpa [#allocation3], 1
    %s1656 = scalar_lea.sflag [#allocation3], 1
    %1657 = vsyncpa %s1656, 1

</llo_original>
